<compile_context>
chip_gen: v7x
topology: tpu7x:2x2x1
jax: 0.10.0
libtpu: 0.0.40
codegen_flags: <defaults>
</compile_context>

<pallas_src>
import jax
import jax.numpy as jnp
from jax.experimental import pallas as pl
from jax.experimental.pallas import tpu as pltpu


def _round_up(x, m):
    return (x + m - 1) // m * m


_LANE = 128
_TILE_M_MAX = 2048
_EPS = 1e-5


# ----------------------------------------------------------------------------
# Kernel 1: sub-pixel ConvTranspose2d(k=4, s=2, p=1), in-kernel tap assembly.
# Grid = (N, ry).  Output written in interleaved [N, H, 2, W, 2*C_pad] layout
# so the final reshape to [N, 2H, 2W, C_pad] is pure metadata.
# ----------------------------------------------------------------------------

def _subpixel_conv_kernel(x3_ref, w_ref, y_ref, sum_ref, ssq_ref):
    # x3_ref : [3, H+2, W, C_in]   W-shifted copies of the zero-padded input
    # w_ref  : [2, 2, 2, 2, C_in, C_pad]   indexed [ry, rx, dy, dx]
    # y_ref  : [H, 1, W, 2*C_pad]  output rows of parity-row ry for image n
    # sum_ref, ssq_ref : [1, C_pad]   per-(n, ry) channel partial stats
    H = y_ref.shape[0]
    W = y_ref.shape[2]
    C_pad = sum_ref.shape[-1]
    ry = pl.program_id(1)

    s = jnp.zeros((1, C_pad), jnp.float32)
    ss = jnp.zeros((1, C_pad), jnp.float32)
    for rx in range(2):
        acc = jnp.zeros((H * W, C_pad), jnp.float32)
        for dy in range(2):
            for dx in range(2):
                # leading-dim static index + leading-dim dynamic slice only
                win = x3_ref[rx + dx, pl.ds(ry + dy, H), :, :]   # [H, W, C_in]
                lhs = win.reshape(H * W, win.shape[-1])
                acc = acc + jnp.dot(lhs, w_ref[ry, rx, dy, dx],
                                    preferred_element_type=jnp.float32)
        s = s + jnp.sum(acc, axis=0, keepdims=True)
        ss = ss + jnp.sum(acc * acc, axis=0, keepdims=True)
        y_ref[:, 0, :, rx * C_pad:(rx + 1) * C_pad] = (
            acc.reshape(H, W, C_pad).astype(y_ref.dtype))
    sum_ref[...] = s
    ssq_ref[...] = ss


def _subpixel_conv_s2(x_nhwc, w_t):
    """ConvTranspose2d(k=4,s=2,p=1).  Returns (y [N,2H,2W,C_pad] bf16 raw conv
    output, per-channel sums, per-channel sums of squares)."""
    N, H, W, C_in = x_nhwc.shape
    C_out = w_t.shape[1]
    C_pad = _round_up(max(C_out, _LANE), _LANE)

    x_pad = jnp.pad(x_nhwc.astype(jnp.bfloat16),
                    ((0, 0), (1, 1), (1, 1), (0, 0)))
    # 3 W-shifted views so the kernel never slices the sublane (W) dim.
    x3 = jnp.stack([x_pad[:, :, o:o + W, :] for o in range(3)], axis=1)
    # x3: [N, 3, H+2, W, C_in]

    taps = []
    for ry in range(2):
        for rx in range(2):
            for dy in range(2):
                for dx in range(2):
                    taps.append(w_t[:, :, 3 - ry - 2 * dy, 3 - rx - 2 * dx])
    w_sub = jnp.stack(taps, axis=0).reshape(2, 2, 2, 2, C_in, C_out)
    if C_pad != C_out:
        w_sub = jnp.pad(w_sub, ((0, 0),) * 4 + ((0, 0), (0, C_pad - C_out)))
    w_sub = w_sub.astype(jnp.bfloat16)

    y, psum, pssq = pl.pallas_call(
        _subpixel_conv_kernel,
        out_shape=(
            jax.ShapeDtypeStruct((N, H, 2, W, 2 * C_pad), jnp.bfloat16),
            jax.ShapeDtypeStruct((N, 2, 1, C_pad), jnp.float32),
            jax.ShapeDtypeStruct((N, 2, 1, C_pad), jnp.float32)),
        grid_spec=pltpu.PrefetchScalarGridSpec(
            num_scalar_prefetch=0,
            grid=(N, 2),
            in_specs=[
                pl.BlockSpec((None, 3, H + 2, W, C_in),
                             lambda n, r: (n, 0, 0, 0, 0)),
                pl.BlockSpec((2, 2, 2, 2, C_in, C_pad),
                             lambda n, r: (0, 0, 0, 0, 0, 0)),
            ],
            out_specs=(
                pl.BlockSpec((None, H, 1, W, 2 * C_pad),
                             lambda n, r: (n, 0, r, 0, 0)),
                pl.BlockSpec((None, None, 1, C_pad),
                             lambda n, r: (n, r, 0, 0)),
                pl.BlockSpec((None, None, 1, C_pad),
                             lambda n, r: (n, r, 0, 0)),
            )),
        compiler_params=pltpu.CompilerParams(
            dimension_semantics=("parallel", "parallel"),
            vmem_limit_bytes=48 * 1024 * 1024),
    )(x3, w_sub)

    y = y.reshape(N, 2 * H, 2 * W, C_pad)          # free (pure metadata)
    csum = jnp.sum(psum, axis=(0, 1)).reshape(C_pad)
    cssq = jnp.sum(pssq, axis=(0, 1)).reshape(C_pad)
    return y, csum, cssq


# ----------------------------------------------------------------------------
# Kernel 2: small-layer fallback — im2col matmul with fused channel stats.
# ----------------------------------------------------------------------------

def _matmul_stats_kernel(p_ref, w_ref, y_ref, sum_ref, ssq_ref):
    @pl.when(pl.program_id(1) == 0)
    def _():
        sum_ref[...] = jnp.zeros_like(sum_ref)
        ssq_ref[...] = jnp.zeros_like(ssq_ref)

    y = jnp.dot(p_ref[...], w_ref[...], preferred_element_type=jnp.float32)
    y_ref[...] = y.astype(y_ref.dtype)
    sum_ref[...] += jnp.sum(y, axis=0, keepdims=True)
    ssq_ref[...] += jnp.sum(y * y, axis=0, keepdims=True)


def _pallas_matmul_stats(patches, w_flat, tile_m):
    P, M_pad, K = patches.shape
    C = w_flat.shape[-1]
    return pl.pallas_call(
        _matmul_stats_kernel,
        out_shape=(jax.ShapeDtypeStruct((P, M_pad, C), jnp.bfloat16),
                   jax.ShapeDtypeStruct((P, 1, C), jnp.float32),
                   jax.ShapeDtypeStruct((P, 1, C), jnp.float32)),
        grid_spec=pltpu.PrefetchScalarGridSpec(
            num_scalar_prefetch=0,
            grid=(P, M_pad // tile_m),
            in_specs=[
                pl.BlockSpec((None, tile_m, K), lambda r, i: (r, i, 0)),
                pl.BlockSpec((None, K, C), lambda r, i: (r, 0, 0)),
            ],
            out_specs=(
                pl.BlockSpec((None, tile_m, C), lambda r, i: (r, i, 0)),
                pl.BlockSpec((None, 1, C), lambda r, i: (r, 0, 0)),
                pl.BlockSpec((None, 1, C), lambda r, i: (r, 0, 0)),
            )),
        compiler_params=pltpu.CompilerParams(
            dimension_semantics=("parallel", "arbitrary")),
    )(patches, w_flat)


def _conv_matmul_stats(patches, w_flat, C_out):
    """patches [P, M, K] @ w_flat [P, K, C_out] -> (y [P,M,C_out], sums)."""
    P, M, K = patches.shape
    K_pad = _round_up(K, _LANE)
    if K_pad != K:
        patches = jnp.pad(patches, ((0, 0), (0, 0), (0, K_pad - K)))
        w_flat = jnp.pad(w_flat, ((0, 0), (0, K_pad - K), (0, 0)))
    C_pad = _round_up(max(C_out, _LANE), _LANE)
    if C_pad != C_out:
        w_flat = jnp.pad(w_flat, ((0, 0), (0, 0), (0, C_pad - C_out)))
    tile_m = min(_TILE_M_MAX, _round_up(M, 16))
    M_pad = _round_up(M, tile_m)
    if M_pad != M:
        patches = jnp.pad(patches, ((0, 0), (0, M_pad - M), (0, 0)))
    patches = patches.astype(jnp.bfloat16)
    w_flat = w_flat.astype(jnp.bfloat16)

    y, psum, pssq = _pallas_matmul_stats(patches, w_flat, tile_m)
    csum = jnp.sum(psum, axis=0).reshape(C_pad)
    cssq = jnp.sum(pssq, axis=0).reshape(C_pad)
    return y[:, :M, :C_out], csum, cssq


def _patches_conv_s2(x_nhwc, w_t):
    """Small stride-2 layers: XLA im2col per parity + matmul kernel."""
    N, H, W, C_in = x_nhwc.shape
    C_out = w_t.shape[1]
    x_pad = jnp.pad(x_nhwc, ((0, 0), (1, 1), (1, 1), (0, 0)))

    pats, wsub = [], []
    for ry in range(2):
        for rx in range(2):
            taps_x, taps_w = [], []
            for dy in range(2):
                for dx in range(2):
                    taps_x.append(
                        x_pad[:, ry + dy:ry + dy + H, rx + dx:rx + dx + W, :])
                    taps_w.append(w_t[:, :, 3 - ry - 2 * dy, 3 - rx - 2 * dx])
            pats.append(jnp.stack(taps_x, axis=3).reshape(N * H * W, 4 * C_in))
            wsub.append(jnp.stack(taps_w, axis=0).reshape(4 * C_in, C_out))
    patches = jnp.stack(pats, axis=0)     # [4, N*H*W, 4*C_in]
    w_flat = jnp.stack(wsub, axis=0)      # [4, 4*C_in, C_out]

    y, csum, cssq = _conv_matmul_stats(patches, w_flat, C_out)
    y = y.reshape(2, 2, N, H, W, C_out).transpose(2, 3, 0, 4, 1, 5)
    return y.reshape(N, 2 * H, 2 * W, C_out), csum, cssq


def _patches_conv_s1(x_nhwc, w_t, k, p):
    """Generic stride-1 ConvTranspose2d (tc1): small im2col + matmul kernel."""
    N, H, W, C_in = x_nhwc.shape
    C_out = w_t.shape[1]
    pad = k - 1 - p
    x_pad = jnp.pad(x_nhwc, ((0, 0), (pad, pad), (pad, pad), (0, 0)))
    Ho = H + 2 * pad - k + 1
    Wo = W + 2 * pad - k + 1

    taps_x, taps_w = [], []
    for dy in range(k):
        for dx in range(k):
            taps_x.append(x_pad[:, dy:dy + Ho, dx:dx + Wo, :])
            taps_w.append(w_t[:, :, k - 1 - dy, k - 1 - dx])
    patches = jnp.stack(taps_x, axis=3).reshape(1, N * Ho * Wo, k * k * C_in)
    w_flat = jnp.stack(taps_w, axis=0).reshape(1, k * k * C_in, C_out)

    y, csum, cssq = _conv_matmul_stats(patches, w_flat, C_out)
    return y.reshape(N, Ho, Wo, C_out), csum, cssq


# ----------------------------------------------------------------------------
# BatchNorm(batch stats, training mode) + ReLU applied as plain jnp (fuses
# into the next layer's input preparation; no standalone elementwise pass).
# ----------------------------------------------------------------------------

def _bn_relu(y, csum, cssq, gamma, beta, count, C_out, eps=_EPS):
    mean = csum[:C_out] / count
    # E[x^2]-E[x]^2 in f32 is fine for these 0.02-scaled weights.
    var = jnp.maximum(cssq[:C_out] / count - mean * mean, 0.0)
    inv = jax.lax.rsqrt(var + eps)
    scale = (gamma * inv).astype(jnp.float32)
    shift = (beta - mean * gamma * inv).astype(jnp.float32)
    a = y[..., :C_out].astype(jnp.float32) * scale + shift
    return jnp.maximum(a, 0.0).astype(jnp.bfloat16)


# ----------------------------------------------------------------------------
# Generator
# ----------------------------------------------------------------------------

def init_generator_params(resolution, key):
    # (name, C_in, C_out, k, s, p, last) in forward order
    defs = [("tc1", 100, 64 * 8, 4, 1, 0, False)]
    if resolution == "highest":
        defs.append(("tc1_1", 64 * 8, 64 * 8, 4, 2, 1, False))
    defs.append(("tc2", 64 * 8, 64 * 4, 4, 2, 1, False))
    if resolution == "high":
        defs.append(("tc2_1", 64 * 4, 64 * 4, 4, 2, 1, False))
    defs.append(("tc3", 64 * 4, 64 * 2, 4, 2, 1, False))
    if resolution == "mid":
        defs.append(("tc3_1", 64 * 2, 64 * 2, 4, 2, 1, False))
    defs.append(("tc4", 64 * 2, 64 * 1, 4, 2, 1, False))
    if resolution == "low":
        defs.append(("tc4_1", 64 * 1, 64 * 1, 4, 2, 1, False))
    defs.append(("tc5", 64 * 1, 3, 4, 2, 1, True))

    params = []
    for name, cin, cout, k, s, p, last in defs:
        key, sub = jax.random.split(key)
        w = 0.02 * jax.random.normal(sub, (cin, cout, k, k), jnp.float32)
        gamma = None if last else jnp.ones((cout,), jnp.float32)
        beta = None if last else jnp.zeros((cout,), jnp.float32)
        params.append((name, w, gamma, beta, k, s, p, last))
    return params


def generator_forward(params, x_nchw):
    x = jnp.transpose(x_nchw, (0, 2, 3, 1)).astype(jnp.bfloat16)   # NHWC
    for _, w, gamma, beta, k, s, p, last in params:
        C_out = w.shape[1]
        if s == 2 and k == 4 and p == 1:
            N, H, W, _ = x.shape
            if H % 8 == 0 and W % 8 == 0:
                y, csum, cssq = _subpixel_conv_s2(x, w)     # big layers
            else:
                y, csum, cssq = _patches_conv_s2(x, w)      # tiny layers
            count = N * (2 * H) * (2 * W)
        else:
            y, csum, cssq = _patches_conv_s1(x, w, k, p)
            count = y.shape[0] * y.shape[1] * y.shape[2]

        if last:
            # tanh only on the real channels, in XLA (fuses with the slice).
            x = jnp.tanh(y[..., :C_out].astype(jnp.float32))
        else:
            x = _bn_relu(y, csum, cssq, gamma, beta, count, C_out)
    return jnp.transpose(x, (0, 3, 1, 2)).astype(jnp.float32)      # NCHW


if __name__ == "__main__":
    key = jax.random.PRNGKey(0)
    pkey, xkey, ck1, ck2 = jax.random.split(key, 4)

    # Consistency check: the two stride-2 lowerings (in-kernel window assembly
    # vs XLA im2col) implement identical math; agree up to bf16 rounding.
    xt = jax.random.normal(ck1, (2, 8, 8, 32), jnp.float32).astype(jnp.bfloat16)
    wt = 0.02 * jax.random.normal(ck2, (32, 16, 4, 4), jnp.float32)
    ya, _, _ = _subpixel_conv_s2(xt, wt)
    yb, _, _ = _patches_conv_s2(xt, wt)
    assert bool(jnp.allclose(ya[..., :16].astype(jnp.float32),
                             yb.astype(jnp.float32), atol=3e-2, rtol=3e-2))

    resolution = "low"   # exercises the extra tc4_1 branch
    params = init_generator_params(resolution, pkey)

    # NCHW latent for tc1 (100 input channels, 1x1 spatial)
    x = jax.random.normal(xkey, (2, 100, 1, 1), jnp.float32)

    fwd = jax.jit(lambda z: generator_forward(params, z))
    y = jax.block_until_ready(fwd(x))

    # 'low': 1->4->8->16->32->(tc4_1)64->(tc5)128, 3 output channels
    assert y.shape == (2, 3, 128, 128), y.shape
    assert bool(jnp.all(jnp.isfinite(y)))
    print("KERNEL_OK")
</pallas_src>

<mosaic_0001>
module attributes {stable_mosaic.version = 11 : i64} {
  func.func @_subpixel_conv_kernel(%arg0: i32, %arg1: i32, %arg2: memref<1x3x10x8x32xbf16, #tpu.memory_space<vmem>>, %arg3: memref<2x2x2x2x32x128xbf16, #tpu.memory_space<vmem>>, %arg4: memref<1x8x1x8x256xbf16, #tpu.memory_space<vmem>>, %arg5: memref<1x1x1x128xf32, #tpu.memory_space<vmem>>, %arg6: memref<1x1x1x128xf32, #tpu.memory_space<vmem>>) attributes {dimension_semantics = [#tpu.dimension_semantics<parallel>, #tpu.dimension_semantics<parallel>], iteration_bounds = array<i64: 2, 2>, scalar_prefetch = 0 : i64, scratch_operands = 0 : i64, tpu.core_type = #tpu.core_type<tc>, window_params = [{transform_indices = @transform_0, window_bounds = array<i64: 1, 3, 10, 8, 32>}, {pipeline_mode = #tpu.pipeline_mode<synchronous>, transform_indices = @transform_1, window_bounds = array<i64: 2, 2, 2, 2, 32, 128>}, {transform_indices = @transform_2, window_bounds = array<i64: 1, 8, 1, 8, 256>}, {transform_indices = @transform_3, window_bounds = array<i64: 1, 1, 1, 128>}, {transform_indices = @transform_4, window_bounds = array<i64: 1, 1, 1, 128>}]} {
    %cst = arith.constant 0.000000e+00 : f32
    %0 = vector.broadcast %cst : f32 to vector<1x128xf32>
    %cst_0 = arith.constant 0.000000e+00 : f32
    %1 = vector.broadcast %cst_0 : f32 to vector<1x128xf32>
    %cst_1 = arith.constant 0.000000e+00 : f32
    %2 = vector.broadcast %cst_1 : f32 to vector<64x128xf32>
    %c0_i32 = arith.constant 0 : i32
    %3 = arith.addi %arg1, %c0_i32 : i32
    %c0 = arith.constant 0 : index
    %c0_2 = arith.constant 0 : index
    %4 = arith.index_cast %3 : i32 to index
    %c0_3 = arith.constant 0 : index
    %c0_4 = arith.constant 0 : index
    %5 = vector.load %arg2[%c0, %c0_2, %4, %c0_3, %c0_4] : memref<1x3x10x8x32xbf16, #tpu.memory_space<vmem>>, vector<1x1x8x8x32xbf16>
    %6 = vector.shape_cast %5 : vector<1x1x8x8x32xbf16> to vector<8x8x32xbf16>
    %7 = vector.shape_cast %6 : vector<8x8x32xbf16> to vector<64x32xbf16>
    %8 = arith.index_cast %arg1 : i32 to index
    %c0_5 = arith.constant 0 : index
    %c0_6 = arith.constant 0 : index
    %c0_7 = arith.constant 0 : index
    %c0_8 = arith.constant 0 : index
    %c0_9 = arith.constant 0 : index
    %9 = vector.load %arg3[%8, %c0_5, %c0_6, %c0_7, %c0_8, %c0_9] : memref<2x2x2x2x32x128xbf16, #tpu.memory_space<vmem>>, vector<1x1x1x1x32x128xbf16>
    %10 = vector.shape_cast %9 : vector<1x1x1x1x32x128xbf16> to vector<32x128xbf16>
    %cst_10 = arith.constant dense<0.000000e+00> : vector<64x128xf32>
    %11 = tpu.matmul %7, %10, %cst_10 {dimension_numbers = #tpu.dot_dimension_numbers<[1], [0], [0], [1], [0, 0, 1, 1], [], []>} : vector<64x32xbf16>, vector<32x128xbf16>, vector<64x128xf32> -> vector<64x128xf32>
    %12 = arith.addf %2, %11 : vector<64x128xf32>
    %c0_i32_11 = arith.constant 0 : i32
    %13 = arith.addi %arg1, %c0_i32_11 : i32
    %c0_12 = arith.constant 0 : index
    %c1 = arith.constant 1 : index
    %14 = arith.index_cast %13 : i32 to index
    %c0_13 = arith.constant 0 : index
    %c0_14 = arith.constant 0 : index
    %15 = vector.load %arg2[%c0_12, %c1, %14, %c0_13, %c0_14] : memref<1x3x10x8x32xbf16, #tpu.memory_space<vmem>>, vector<1x1x8x8x32xbf16>
    %16 = vector.shape_cast %15 : vector<1x1x8x8x32xbf16> to vector<8x8x32xbf16>
    %17 = vector.shape_cast %16 : vector<8x8x32xbf16> to vector<64x32xbf16>
    %18 = arith.index_cast %arg1 : i32 to index
    %c0_15 = arith.constant 0 : index
    %c0_16 = arith.constant 0 : index
    %c1_17 = arith.constant 1 : index
    %c0_18 = arith.constant 0 : index
    %c0_19 = arith.constant 0 : index
    %19 = vector.load %arg3[%18, %c0_15, %c0_16, %c1_17, %c0_18, %c0_19] : memref<2x2x2x2x32x128xbf16, #tpu.memory_space<vmem>>, vector<1x1x1x1x32x128xbf16>
    %20 = vector.shape_cast %19 : vector<1x1x1x1x32x128xbf16> to vector<32x128xbf16>
    %cst_20 = arith.constant dense<0.000000e+00> : vector<64x128xf32>
    %21 = tpu.matmul %17, %20, %cst_20 {dimension_numbers = #tpu.dot_dimension_numbers<[1], [0], [0], [1], [0, 0, 1, 1], [], []>} : vector<64x32xbf16>, vector<32x128xbf16>, vector<64x128xf32> -> vector<64x128xf32>
    %22 = arith.addf %12, %21 : vector<64x128xf32>
    %c1_i32 = arith.constant 1 : i32
    %23 = arith.addi %arg1, %c1_i32 : i32
    %c0_21 = arith.constant 0 : index
    %c0_22 = arith.constant 0 : index
    %24 = arith.index_cast %23 : i32 to index
    %c0_23 = arith.constant 0 : index
    %c0_24 = arith.constant 0 : index
    %25 = vector.load %arg2[%c0_21, %c0_22, %24, %c0_23, %c0_24] : memref<1x3x10x8x32xbf16, #tpu.memory_space<vmem>>, vector<1x1x8x8x32xbf16>
    %26 = vector.shape_cast %25 : vector<1x1x8x8x32xbf16> to vector<8x8x32xbf16>
    %27 = vector.shape_cast %26 : vector<8x8x32xbf16> to vector<64x32xbf16>
    %28 = arith.index_cast %arg1 : i32 to index
    %c0_25 = arith.constant 0 : index
    %c1_26 = arith.constant 1 : index
    %c0_27 = arith.constant 0 : index
    %c0_28 = arith.constant 0 : index
    %c0_29 = arith.constant 0 : index
    %29 = vector.load %arg3[%28, %c0_25, %c1_26, %c0_27, %c0_28, %c0_29] : memref<2x2x2x2x32x128xbf16, #tpu.memory_space<vmem>>, vector<1x1x1x1x32x128xbf16>
    %30 = vector.shape_cast %29 : vector<1x1x1x1x32x128xbf16> to vector<32x128xbf16>
    %cst_30 = arith.constant dense<0.000000e+00> : vector<64x128xf32>
    %31 = tpu.matmul %27, %30, %cst_30 {dimension_numbers = #tpu.dot_dimension_numbers<[1], [0], [0], [1], [0, 0, 1, 1], [], []>} : vector<64x32xbf16>, vector<32x128xbf16>, vector<64x128xf32> -> vector<64x128xf32>
    %32 = arith.addf %22, %31 : vector<64x128xf32>
    %c1_i32_31 = arith.constant 1 : i32
    %33 = arith.addi %arg1, %c1_i32_31 : i32
    %c0_32 = arith.constant 0 : index
    %c1_33 = arith.constant 1 : index
    %34 = arith.index_cast %33 : i32 to index
    %c0_34 = arith.constant 0 : index
    %c0_35 = arith.constant 0 : index
    %35 = vector.load %arg2[%c0_32, %c1_33, %34, %c0_34, %c0_35] : memref<1x3x10x8x32xbf16, #tpu.memory_space<vmem>>, vector<1x1x8x8x32xbf16>
    %36 = vector.shape_cast %35 : vector<1x1x8x8x32xbf16> to vector<8x8x32xbf16>
    %37 = vector.shape_cast %36 : vector<8x8x32xbf16> to vector<64x32xbf16>
    %38 = arith.index_cast %arg1 : i32 to index
    %c0_36 = arith.constant 0 : index
    %c1_37 = arith.constant 1 : index
    %c1_38 = arith.constant 1 : index
    %c0_39 = arith.constant 0 : index
    %c0_40 = arith.constant 0 : index
    %39 = vector.load %arg3[%38, %c0_36, %c1_37, %c1_38, %c0_39, %c0_40] : memref<2x2x2x2x32x128xbf16, #tpu.memory_space<vmem>>, vector<1x1x1x1x32x128xbf16>
    %40 = vector.shape_cast %39 : vector<1x1x1x1x32x128xbf16> to vector<32x128xbf16>
    %cst_41 = arith.constant dense<0.000000e+00> : vector<64x128xf32>
    %41 = tpu.matmul %37, %40, %cst_41 {dimension_numbers = #tpu.dot_dimension_numbers<[1], [0], [0], [1], [0, 0, 1, 1], [], []>} : vector<64x32xbf16>, vector<32x128xbf16>, vector<64x128xf32> -> vector<64x128xf32>
    %42 = arith.addf %32, %41 : vector<64x128xf32>
    %cst_42 = arith.constant dense<0.000000e+00> : vector<128xf32>
    %43 = vector.multi_reduction <add>, %42, %cst_42 [0] : vector<64x128xf32> to vector<128xf32>
    %44 = vector.shape_cast %43 : vector<128xf32> to vector<1x128xf32>
    %45 = arith.addf %0, %44 : vector<1x128xf32>
    %46 = arith.mulf %42, %42 : vector<64x128xf32>
    %cst_43 = arith.constant dense<0.000000e+00> : vector<128xf32>
    %47 = vector.multi_reduction <add>, %46, %cst_43 [0] : vector<64x128xf32> to vector<128xf32>
    %48 = vector.shape_cast %47 : vector<128xf32> to vector<1x128xf32>
    %49 = arith.addf %1, %48 : vector<1x128xf32>
    %50 = vector.shape_cast %42 : vector<64x128xf32> to vector<8x8x128xf32>
    %51 = arith.truncf %50 : vector<8x8x128xf32> to vector<8x8x128xbf16>
    %c0_44 = arith.constant 0 : index
    %c0_45 = arith.constant 0 : index
    %c0_46 = arith.constant 0 : index
    %c0_47 = arith.constant 0 : index
    %c0_48 = arith.constant 0 : index
    %52 = vector.load %arg4[%c0_44, %c0_45, %c0_46, %c0_47, %c0_48] : memref<1x8x1x8x256xbf16, #tpu.memory_space<vmem>>, vector<1x8x1x8x128xbf16>
    %53 = vector.shape_cast %52 : vector<1x8x1x8x128xbf16> to vector<8x8x128xbf16>
    %54 = vector.shape_cast %51 : vector<8x8x128xbf16> to vector<1x8x1x8x128xbf16>
    tpu.vector_store %arg4[%c0_44, %c0_45, %c0_46, %c0_47, %c0_48], %54 {strides = array<i32>} : memref<1x8x1x8x256xbf16, #tpu.memory_space<vmem>>, vector<1x8x1x8x128xbf16>,
    %cst_49 = arith.constant 0.000000e+00 : f32
    %55 = vector.broadcast %cst_49 : f32 to vector<64x128xf32>
    %c0_i32_50 = arith.constant 0 : i32
    %56 = arith.addi %arg1, %c0_i32_50 : i32
    %c0_51 = arith.constant 0 : index
    %c1_52 = arith.constant 1 : index
    %57 = arith.index_cast %56 : i32 to index
    %c0_53 = arith.constant 0 : index
    %c0_54 = arith.constant 0 : index
    %58 = vector.load %arg2[%c0_51, %c1_52, %57, %c0_53, %c0_54] : memref<1x3x10x8x32xbf16, #tpu.memory_space<vmem>>, vector<1x1x8x8x32xbf16>
    %59 = vector.shape_cast %58 : vector<1x1x8x8x32xbf16> to vector<8x8x32xbf16>
    %60 = vector.shape_cast %59 : vector<8x8x32xbf16> to vector<64x32xbf16>
    %61 = arith.index_cast %arg1 : i32 to index
    %c1_55 = arith.constant 1 : index
    %c0_56 = arith.constant 0 : index
    %c0_57 = arith.constant 0 : index
    %c0_58 = arith.constant 0 : index
    %c0_59 = arith.constant 0 : index
    %62 = vector.load %arg3[%61, %c1_55, %c0_56, %c0_57, %c0_58, %c0_59] : memref<2x2x2x2x32x128xbf16, #tpu.memory_space<vmem>>, vector<1x1x1x1x32x128xbf16>
    %63 = vector.shape_cast %62 : vector<1x1x1x1x32x128xbf16> to vector<32x128xbf16>
    %cst_60 = arith.constant dense<0.000000e+00> : vector<64x128xf32>
    %64 = tpu.matmul %60, %63, %cst_60 {dimension_numbers = #tpu.dot_dimension_numbers<[1], [0], [0], [1], [0, 0, 1, 1], [], []>} : vector<64x32xbf16>, vector<32x128xbf16>, vector<64x128xf32> -> vector<64x128xf32>
    %65 = arith.addf %55, %64 : vector<64x128xf32>
    %c0_i32_61 = arith.constant 0 : i32
    %66 = arith.addi %arg1, %c0_i32_61 : i32
    %c0_62 = arith.constant 0 : index
    %c2 = arith.constant 2 : index
    %67 = arith.index_cast %66 : i32 to index
    %c0_63 = arith.constant 0 : index
    %c0_64 = arith.constant 0 : index
    %68 = vector.load %arg2[%c0_62, %c2, %67, %c0_63, %c0_64] : memref<1x3x10x8x32xbf16, #tpu.memory_space<vmem>>, vector<1x1x8x8x32xbf16>
    %69 = vector.shape_cast %68 : vector<1x1x8x8x32xbf16> to vector<8x8x32xbf16>
    %70 = vector.shape_cast %69 : vector<8x8x32xbf16> to vector<64x32xbf16>
    %71 = arith.index_cast %arg1 : i32 to index
    %c1_65 = arith.constant 1 : index
    %c0_66 = arith.constant 0 : index
    %c1_67 = arith.constant 1 : index
    %c0_68 = arith.constant 0 : index
    %c0_69 = arith.constant 0 : index
    %72 = vector.load %arg3[%71, %c1_65, %c0_66, %c1_67, %c0_68, %c0_69] : memref<2x2x2x2x32x128xbf16, #tpu.memory_space<vmem>>, vector<1x1x1x1x32x128xbf16>
    %73 = vector.shape_cast %72 : vector<1x1x1x1x32x128xbf16> to vector<32x128xbf16>
    %cst_70 = arith.constant dense<0.000000e+00> : vector<64x128xf32>
    %74 = tpu.matmul %70, %73, %cst_70 {dimension_numbers = #tpu.dot_dimension_numbers<[1], [0], [0], [1], [0, 0, 1, 1], [], []>} : vector<64x32xbf16>, vector<32x128xbf16>, vector<64x128xf32> -> vector<64x128xf32>
    %75 = arith.addf %65, %74 : vector<64x128xf32>
    %c1_i32_71 = arith.constant 1 : i32
    %76 = arith.addi %arg1, %c1_i32_71 : i32
    %c0_72 = arith.constant 0 : index
    %c1_73 = arith.constant 1 : index
    %77 = arith.index_cast %76 : i32 to index
    %c0_74 = arith.constant 0 : index
    %c0_75 = arith.constant 0 : index
    %78 = vector.load %arg2[%c0_72, %c1_73, %77, %c0_74, %c0_75] : memref<1x3x10x8x32xbf16, #tpu.memory_space<vmem>>, vector<1x1x8x8x32xbf16>
    %79 = vector.shape_cast %78 : vector<1x1x8x8x32xbf16> to vector<8x8x32xbf16>
    %80 = vector.shape_cast %79 : vector<8x8x32xbf16> to vector<64x32xbf16>
    %81 = arith.index_cast %arg1 : i32 to index
    %c1_76 = arith.constant 1 : index
    %c1_77 = arith.constant 1 : index
    %c0_78 = arith.constant 0 : index
    %c0_79 = arith.constant 0 : index
    %c0_80 = arith.constant 0 : index
    %82 = vector.load %arg3[%81, %c1_76, %c1_77, %c0_78, %c0_79, %c0_80] : memref<2x2x2x2x32x128xbf16, #tpu.memory_space<vmem>>, vector<1x1x1x1x32x128xbf16>
    %83 = vector.shape_cast %82 : vector<1x1x1x1x32x128xbf16> to vector<32x128xbf16>
    %cst_81 = arith.constant dense<0.000000e+00> : vector<64x128xf32>
    %84 = tpu.matmul %80, %83, %cst_81 {dimension_numbers = #tpu.dot_dimension_numbers<[1], [0], [0], [1], [0, 0, 1, 1], [], []>} : vector<64x32xbf16>, vector<32x128xbf16>, vector<64x128xf32> -> vector<64x128xf32>
    %85 = arith.addf %75, %84 : vector<64x128xf32>
    %c1_i32_82 = arith.constant 1 : i32
    %86 = arith.addi %arg1, %c1_i32_82 : i32
    %c0_83 = arith.constant 0 : index
    %c2_84 = arith.constant 2 : index
    %87 = arith.index_cast %86 : i32 to index
    %c0_85 = arith.constant 0 : index
    %c0_86 = arith.constant 0 : index
    %88 = vector.load %arg2[%c0_83, %c2_84, %87, %c0_85, %c0_86] : memref<1x3x10x8x32xbf16, #tpu.memory_space<vmem>>, vector<1x1x8x8x32xbf16>
    %89 = vector.shape_cast %88 : vector<1x1x8x8x32xbf16> to vector<8x8x32xbf16>
    %90 = vector.shape_cast %89 : vector<8x8x32xbf16> to vector<64x32xbf16>
    %91 = arith.index_cast %arg1 : i32 to index
    %c1_87 = arith.constant 1 : index
    %c1_88 = arith.constant 1 : index
    %c1_89 = arith.constant 1 : index
    %c0_90 = arith.constant 0 : index
    %c0_91 = arith.constant 0 : index
    %92 = vector.load %arg3[%91, %c1_87, %c1_88, %c1_89, %c0_90, %c0_91] : memref<2x2x2x2x32x128xbf16, #tpu.memory_space<vmem>>, vector<1x1x1x1x32x128xbf16>
    %93 = vector.shape_cast %92 : vector<1x1x1x1x32x128xbf16> to vector<32x128xbf16>
    %cst_92 = arith.constant dense<0.000000e+00> : vector<64x128xf32>
    %94 = tpu.matmul %90, %93, %cst_92 {dimension_numbers = #tpu.dot_dimension_numbers<[1], [0], [0], [1], [0, 0, 1, 1], [], []>} : vector<64x32xbf16>, vector<32x128xbf16>, vector<64x128xf32> -> vector<64x128xf32>
    %95 = arith.addf %85, %94 : vector<64x128xf32>
    %cst_93 = arith.constant dense<0.000000e+00> : vector<128xf32>
    %96 = vector.multi_reduction <add>, %95, %cst_93 [0] : vector<64x128xf32> to vector<128xf32>
    %97 = vector.shape_cast %96 : vector<128xf32> to vector<1x128xf32>
    %98 = arith.addf %45, %97 : vector<1x128xf32>
    %99 = arith.mulf %95, %95 : vector<64x128xf32>
    %cst_94 = arith.constant dense<0.000000e+00> : vector<128xf32>
    %100 = vector.multi_reduction <add>, %99, %cst_94 [0] : vector<64x128xf32> to vector<128xf32>
    %101 = vector.shape_cast %100 : vector<128xf32> to vector<1x128xf32>
    %102 = arith.addf %49, %101 : vector<1x128xf32>
    %103 = vector.shape_cast %95 : vector<64x128xf32> to vector<8x8x128xf32>
    %104 = arith.truncf %103 : vector<8x8x128xf32> to vector<8x8x128xbf16>
    %c0_95 = arith.constant 0 : index
    %c0_96 = arith.constant 0 : index
    %c0_97 = arith.constant 0 : index
    %c0_98 = arith.constant 0 : index
    %c128 = arith.constant 128 : index
    %105 = vector.load %arg4[%c0_95, %c0_96, %c0_97, %c0_98, %c128] : memref<1x8x1x8x256xbf16, #tpu.memory_space<vmem>>, vector<1x8x1x8x128xbf16>
    %106 = vector.shape_cast %105 : vector<1x8x1x8x128xbf16> to vector<8x8x128xbf16>
    %107 = vector.shape_cast %104 : vector<8x8x128xbf16> to vector<1x8x1x8x128xbf16>
    tpu.vector_store %arg4[%c0_95, %c0_96, %c0_97, %c0_98, %c128], %107 {strides = array<i32>} : memref<1x8x1x8x256xbf16, #tpu.memory_space<vmem>>, vector<1x8x1x8x128xbf16>,
    %c0_99 = arith.constant 0 : index
    %c0_100 = arith.constant 0 : index
    %c0_101 = arith.constant 0 : index
    %c0_102 = arith.constant 0 : index
    %108 = vector.load %arg5[%c0_99, %c0_100, %c0_101, %c0_102] : memref<1x1x1x128xf32, #tpu.memory_space<vmem>>, vector<1x1x1x128xf32>
    %109 = vector.shape_cast %108 : vector<1x1x1x128xf32> to vector<1x128xf32>
    %110 = vector.shape_cast %98 : vector<1x128xf32> to vector<1x1x1x128xf32>
    tpu.vector_store %arg5[%c0_99, %c0_100, %c0_101, %c0_102], %110 {strides = array<i32>} : memref<1x1x1x128xf32, #tpu.memory_space<vmem>>, vector<1x1x1x128xf32>,
    %c0_103 = arith.constant 0 : index
    %c0_104 = arith.constant 0 : index
    %c0_105 = arith.constant 0 : index
    %c0_106 = arith.constant 0 : index
    %111 = vector.load %arg6[%c0_103, %c0_104, %c0_105, %c0_106] : memref<1x1x1x128xf32, #tpu.memory_space<vmem>>, vector<1x1x1x128xf32>
    %112 = vector.shape_cast %111 : vector<1x1x1x128xf32> to vector<1x128xf32>
    %113 = vector.shape_cast %102 : vector<1x128xf32> to vector<1x1x1x128xf32>
    tpu.vector_store %arg6[%c0_103, %c0_104, %c0_105, %c0_106], %113 {strides = array<i32>} : memref<1x1x1x128xf32, #tpu.memory_space<vmem>>, vector<1x1x1x128xf32>,
    return
  }
  func.func @transform_0(%arg0: i32, %arg1: i32) -> (i32, i32, i32, i32, i32) {
    %c0_i32 = arith.constant 0 : i32
    %c0_i32_0 = arith.constant 0 : i32
    %c0_i32_1 = arith.constant 0 : i32
    %c0_i32_2 = arith.constant 0 : i32
    %c0_i32_3 = arith.constant 0 : i32
    return %arg0, %c0_i32, %c0_i32_0, %c0_i32_1, %c0_i32_2 : i32, i32, i32, i32, i32
  }
  func.func @transform_1(%arg0: i32, %arg1: i32) -> (i32, i32, i32, i32, i32, i32) {
    %c0_i32 = arith.constant 0 : i32
    %c0_i32_0 = arith.constant 0 : i32
    %c0_i32_1 = arith.constant 0 : i32
    %c0_i32_2 = arith.constant 0 : i32
    %c0_i32_3 = arith.constant 0 : i32
    %c0_i32_4 = arith.constant 0 : i32
    %c0_i32_5 = arith.constant 0 : i32
    return %c0_i32, %c0_i32_0, %c0_i32_1, %c0_i32_2, %c0_i32_3, %c0_i32_4 : i32, i32, i32, i32, i32, i32
  }
  func.func @transform_2(%arg0: i32, %arg1: i32) -> (i32, i32, i32, i32, i32) {
    %c0_i32 = arith.constant 0 : i32
    %c0_i32_0 = arith.constant 0 : i32
    %c0_i32_1 = arith.constant 0 : i32
    %c0_i32_2 = arith.constant 0 : i32
    return %arg0, %c0_i32, %arg1, %c0_i32_0, %c0_i32_1 : i32, i32, i32, i32, i32
  }
  func.func @transform_3(%arg0: i32, %arg1: i32) -> (i32, i32, i32, i32) {
    %c0_i32 = arith.constant 0 : i32
    %c0_i32_0 = arith.constant 0 : i32
    %c0_i32_1 = arith.constant 0 : i32
    return %arg0, %arg1, %c0_i32, %c0_i32_0 : i32, i32, i32, i32
  }
  func.func @transform_4(%arg0: i32, %arg1: i32) -> (i32, i32, i32, i32) {
    %c0_i32 = arith.constant 0 : i32
    %c0_i32_0 = arith.constant 0 : i32
    %c0_i32_1 = arith.constant 0 : i32
    return %arg0, %arg1, %c0_i32, %c0_i32_0 : i32, i32, i32, i32
  }
}

</mosaic_0001>

<llo_original>
// kernel: tpu_custom_call.1
$region0: #{tpu_custom_call.1}
  #allocation0 [shape = 'u32[]', space=smem, size = 0x4, offset = 0x4, fixed_abs, tag = 'smem constant byte address 0x4 - core index']
  #allocation1 [shape = 'u32[144,128]{1,0:T(1,128)}', space=vmem, size = 0x12000, scoped, tag = 'internal scratch']
  %s0 = inlined_call_operand.hbm [shape: bf16[2,3,10,8,32], index: 0, kind: input, shape index: {}]
  %s1 = inlined_call_operand.hbm [shape: bf16[2,2,2,2,32,128], index: 1, kind: input, shape index: {}]
  %s2 = inlined_call_operand.hbm [shape: bf16[2,8,2,8,256], index: 2, kind: output, shape index: {0}]
  %s3 = inlined_call_operand.hbm [shape: f32[2,2,1,128], index: 3, kind: output, shape index: {1}]
  %s4 = inlined_call_operand.hbm [shape: f32[2,2,1,128], index: 4, kind: output, shape index: {2}]
  %5 = xla_tuple %s2, %s3, %s4
  %s6 = sld [smem:[#allocation0]]
  $region65: #{tpu_custom_call.1} parent=0
    _
  %s8 = ssub.s32 1, %s6
  %s9 = scalar_select 0, %s8, %s6
  $region1: #{tpu_custom_call.1} parent=0
    #allocation2 [shape = 'u8[122880]{0}', space=vmem, size = 0x1e000, scoped, tag = 'input window, operand 0']
    #allocation3 [shape = 's32[2]{0}', space=sflag, size = 0x8, scoped, tag = 'scoped memory for tpu_custom_call.1']
    #allocation4 [shape = 's32[2]{0}', space=sflag, size = 0x8, scoped, tag = 'scoped memory for tpu_custom_call.1']
    #allocation5 [shape = 'u8[131072]{0}', space=vmem, size = 0x20000, scoped, tag = 'input window, operand 1, single buffered']
    #allocation6 [shape = 's32[1]{0}', space=sflag, size = 0x4, scoped, tag = 'scoped memory for tpu_custom_call.1']
    #allocation7 [shape = 'u8[65536]{0}', space=vmem, size = 0x10000, scoped, tag = 'output window, operand 0']
    #allocation8 [shape = 'u8[1024]{0}', space=vmem, size = 0x400, scoped, tag = 'output window, operand 1']
    #allocation9 [shape = 's32[2]{0}', space=sflag, size = 0x8, scoped, tag = 'scoped memory for tpu_custom_call.1']
    #allocation10 [shape = 'u8[1024]{0}', space=vmem, size = 0x400, scoped, tag = 'output window, operand 2']
    %10 = vsyncpa [#allocation3], 0
    %s11 = scalar_lea.sflag [#allocation3], 1
    %12 = vsyncpa %s11, 0
    %13 = vsyncpa [#allocation6], 0
    %14 = vsyncpa [#allocation4], 0
    %s15 = scalar_lea.sflag [#allocation4], 1
    %16 = vsyncpa %s15, 0
    %17 = vsyncpa [#allocation9], 0
    %s18 = scalar_lea.sflag [#allocation9], 1
    %19 = vsyncpa %s18, 0
    loop: start=0, step=1, limit=6
    $region2: #{tpu_custom_call.1} parent=1 // loop_pre_header
      _
    $region3: #{tpu_custom_call.1} parent=1 // loop_header
      %s21 = sphi 0, %s25
      %p22 = scmp.ge.s32.totalorder %s21, 6
      %s28 = sphi 0, %s40
      %s29 = sphi 0, %s36
      %s30 = sphi 0, %s28
      %s31 = sphi 0, %s29
      %s32 = sphi 0, %s30
      %s33 = sphi 0, %s31
      %s43 = sphi 0, %s45
      %s46 = sphi 0, %s43
      %s47 = sphi 0, %s46
      %s63 = sphi 0, %s47
      %s67 = sphi 0, %s67
      %s69 = sphi 0, %s67
      %s70 = sphi 0, %s69
      %s84 = sphi 0, %s70
      %s92 = sphi 0, %s94
      %s95 = sphi 0, %s92
      %s96 = sphi 0, %s95
      %s112 = sphi 0, %s96
      %s120 = sphi 0, %s122
      %s123 = sphi 0, %s120
      %s124 = sphi 0, %s123
      %s140 = sphi 0, %s124
      %s148 = sphi 0, %s150
      %s151 = sphi 0, %s148
      %s152 = sphi 0, %s151
      %s168 = sphi 0, %s152
    $region4: #{tpu_custom_call.1} parent=1 // loop_header_branch
      %24 = sbr.rel (%p22) target = $region8
    $region5: #{tpu_custom_call.1} parent=1 // loop_body
      %s26 = ssub.s32 %s21, 1
      %s27 = ssub.s32 %s21, 2
      %s34 = sadd.s32 1, %s29
      %p35 = scmp.ge.s32.totalorder %s34, 2
      %s36 = scalar_select %p35, 0, %s34
      %s37 = sadd.s32 1, %s28
      %s38 = scalar_select %p35, %s37, %s28
      %p39 = scmp.ge.s32.totalorder %s38, 2
      %s40 = scalar_select %p39, 0, %s38
      %s41 = ssub.s32 %s28, %s40
      %p42 = scmp.eq.s32.totalorder %s41, 0
      %s44 = sadd.s32 %s43, 1
      %s45 = scalar_select %p42, %s43, %s44
      %p48 = pneg %p42
      %p49 = scmp.eq.s32.totalorder %s21, 3
      %p50 = por %p48, %p49
      %p51 = scmp.ne.s32.totalorder %s43, %s46
      %p52 = scmp.eq.s32.totalorder %s21, 0
      %p53 = por %p51, %p52
      %p54 = scmp.ne.s32.totalorder %s43, %s46
      %p55 = scmp.eq.s32.totalorder %s26, 3
      %p56 = por %p54, %p55
      %p57 = scmp.ne.s32.totalorder %s46, %s47
      %p58 = scmp.eq.s32.totalorder %s26, 0
      %p59 = por %p57, %p58
      %p60 = scmp.ne.s32.totalorder %s46, %s47
      %p61 = scmp.eq.s32.totalorder %s27, 3
      %p62 = por %p60, %p61
      %p64 = scmp.ne.s32.totalorder %s47, %s63
      %p65 = scmp.eq.s32.totalorder %s27, 0
      %p66 = por %p64, %p65
      %s68 = sadd.s32 %s67, 1
      %p71 = scmp.eq.s32.totalorder %s21, 3
      %p72 = scmp.ne.s32.totalorder %s67, %s69
      %p73 = scmp.eq.s32.totalorder %s21, 0
      %p74 = por %p72, %p73
      %p75 = scmp.ne.s32.totalorder %s67, %s69
      %p76 = scmp.eq.s32.totalorder %s26, 3
      %p77 = por %p75, %p76
      %p78 = scmp.ne.s32.totalorder %s69, %s70
      %p79 = scmp.eq.s32.totalorder %s26, 0
      %p80 = por %p78, %p79
      %p81 = scmp.ne.s32.totalorder %s69, %s70
      %p82 = scmp.eq.s32.totalorder %s27, 3
      %p83 = por %p81, %p82
      %p85 = scmp.ne.s32.totalorder %s70, %s84
      %p86 = scmp.eq.s32.totalorder %s27, 0
      %p87 = por %p85, %p86
      %s88 = ssub.s32 %s28, %s40
      %s89 = ssub.s32 %s29, %s36
      %s90 = sor.u32 %s88, %s89
      %p91 = scmp.eq.s32.totalorder %s90, 0
      %s93 = sadd.s32 %s92, 1
      %s94 = scalar_select %p91, %s92, %s93
      %p97 = pneg %p91
      %p98 = scmp.eq.s32.totalorder %s21, 3
      %p99 = por %p97, %p98
      %p100 = scmp.ne.s32.totalorder %s92, %s95
      %p101 = scmp.eq.s32.totalorder %s21, 0
      %p102 = por %p100, %p101
      %p103 = scmp.ne.s32.totalorder %s92, %s95
      %p104 = scmp.eq.s32.totalorder %s26, 3
      %p105 = por %p103, %p104
      %p106 = scmp.ne.s32.totalorder %s95, %s96
      %p107 = scmp.eq.s32.totalorder %s26, 0
      %p108 = por %p106, %p107
      %p109 = scmp.ne.s32.totalorder %s95, %s96
      %p110 = scmp.eq.s32.totalorder %s27, 3
      %p111 = por %p109, %p110
      %p113 = scmp.ne.s32.totalorder %s96, %s112
      %p114 = scmp.eq.s32.totalorder %s27, 0
      %p115 = por %p113, %p114
      %s116 = ssub.s32 %s28, %s40
      %s117 = ssub.s32 %s29, %s36
      %s118 = sor.u32 %s116, %s117
      %p119 = scmp.eq.s32.totalorder %s118, 0
      %s121 = sadd.s32 %s120, 1
      %s122 = scalar_select %p119, %s120, %s121
      %p125 = pneg %p119
      %p126 = scmp.eq.s32.totalorder %s21, 3
      %p127 = por %p125, %p126
      %p128 = scmp.ne.s32.totalorder %s120, %s123
      %p129 = scmp.eq.s32.totalorder %s21, 0
      %p130 = por %p128, %p129
      %p131 = scmp.ne.s32.totalorder %s120, %s123
      %p132 = scmp.eq.s32.totalorder %s26, 3
      %p133 = por %p131, %p132
      %p134 = scmp.ne.s32.totalorder %s123, %s124
      %p135 = scmp.eq.s32.totalorder %s26, 0
      %p136 = por %p134, %p135
      %p137 = scmp.ne.s32.totalorder %s123, %s124
      %p138 = scmp.eq.s32.totalorder %s27, 3
      %p139 = por %p137, %p138
      %p141 = scmp.ne.s32.totalorder %s124, %s140
      %p142 = scmp.eq.s32.totalorder %s27, 0
      %p143 = por %p141, %p142
      %s144 = ssub.s32 %s28, %s40
      %s145 = ssub.s32 %s29, %s36
      %s146 = sor.u32 %s144, %s145
      %p147 = scmp.eq.s32.totalorder %s146, 0
      %s149 = sadd.s32 %s148, 1
      %s150 = scalar_select %p147, %s148, %s149
      %p153 = pneg %p147
      %p154 = scmp.eq.s32.totalorder %s21, 3
      %p155 = por %p153, %p154
      %p156 = scmp.ne.s32.totalorder %s148, %s151
      %p157 = scmp.eq.s32.totalorder %s21, 0
      %p158 = por %p156, %p157
      %p159 = scmp.ne.s32.totalorder %s148, %s151
      %p160 = scmp.eq.s32.totalorder %s26, 3
      %p161 = por %p159, %p160
      %p162 = scmp.ne.s32.totalorder %s151, %s152
      %p163 = scmp.eq.s32.totalorder %s26, 0
      %p164 = por %p162, %p163
      %p165 = scmp.ne.s32.totalorder %s151, %s152
      %p166 = scmp.eq.s32.totalorder %s27, 3
      %p167 = por %p165, %p166
      %p169 = scmp.ne.s32.totalorder %s152, %s168
      %p170 = scmp.eq.s32.totalorder %s27, 0
      %p171 = por %p169, %p170
      %p172 = scmp.le.s32.totalorder 1, %s21
      %p173 = scmp.lt.s32.totalorder %s21, 5
      %p174 = pnand %p172, %p173
      %p175 = pneg %p174
      // Predicated region
      $region9: #{tpu_custom_call.1} parent=5 // pred_check
        _
      $region10: #{tpu_custom_call.1} parent=5 // pred_check_branch
        %177 = sbr.rel (%p174) target = $region12
      $region11: #{tpu_custom_call.1} parent=5 // pred_region
        %s178 = ssub.s32 %s21, 1
        // Predicated region
        $region13: #{tpu_custom_call.1} parent=11 // pred_check
          %p179 = pneg %p80
        $region14: #{tpu_custom_call.1} parent=11 // pred_check_branch
          %181 = sbr.rel (%p179) target = $region16
        $region15: #{tpu_custom_call.1} parent=11 // pred_region
          %s183 = ssub.s32 4096, 4096
          %184 = vsyncadd [#allocation6], %s183
          %s185 = sshll.u32 [#allocation5], 4
          %s186 = int_to_ptr.vmem [resolvable:$true] %s185
          %191 = dma.hbm_to_vmem [thread:$0]  %s1, 4096, %s186, [#allocation6], 64, 64, 4
        $region16: #{tpu_custom_call.1} parent=11 // pred_fallthru
          _
      $region12: #{tpu_custom_call.1} parent=5 // pred_fallthru
        _
      %p192 = scmp.lt.s32.totalorder %s21, 4
      // Predicated region
      $region17: #{tpu_custom_call.1} parent=5 // pred_check
        %p193 = pneg %p192
      $region18: #{tpu_custom_call.1} parent=5 // pred_check_branch
        %195 = sbr.rel (%p193) target = $region20
      $region19: #{tpu_custom_call.1} parent=5 // pred_region
        // Predicated region
        $region21: #{tpu_custom_call.1} parent=19 // pred_check
          %p196 = pneg %p53
        $region22: #{tpu_custom_call.1} parent=19 // pred_check_branch
          %198 = sbr.rel (%p196) target = $region24
        $region23: #{tpu_custom_call.1} parent=19 // pred_region
          %s199 = sand.u32 %s43, 1
          %s200 = scalar_lea.sflag [#allocation3], %s199
          %s201 = sand.u32 %s43, 1
          %s202 = smul.addr %s201, 120
          %s203 = scalar_lea.vmem [#allocation2], %s202
          %s205 = ssub.s32 1920, 1920
          %206 = vsyncadd %s200, %s205
          %s207 = smul.addr %s28, 30
          %s208 = smul.addr %s207, 64
          %s209 = scalar_lea.hbm %s0, %s208
          %s210 = sshll.u32 %s203, 4
          %s211 = int_to_ptr.vmem [resolvable:$true] %s210
          %216 = dma.hbm_to_vmem [thread:$0]  %s209, 1920, %s211, %s200, 64, 64, 4
        $region24: #{tpu_custom_call.1} parent=19 // pred_fallthru
          _
      $region20: #{tpu_custom_call.1} parent=5 // pred_fallthru
        _
      %p217 = scmp.le.s32.totalorder 1, %s21
      %p218 = scmp.lt.s32.totalorder %s21, 5
      %p219 = pnand %p217, %p218
      %p220 = pneg %p219
      // Predicated region
      $region25: #{tpu_custom_call.1} parent=5 // pred_check
        _
      $region26: #{tpu_custom_call.1} parent=5 // pred_check_branch
        %222 = sbr.rel (%p219) target = $region28
      $region27: #{tpu_custom_call.1} parent=5 // pred_region
        %s223 = ssub.s32 %s21, 1
        %s224 = sand.u32 %s46, 1
        %s225 = scalar_lea.sflag [#allocation3], %s224
        %s226 = sand.u32 %s46, 1
        %s227 = smul.addr %s226, 120
        %s228 = scalar_lea.vmem [#allocation2], %s227
        // Predicated region
        $region29: #{tpu_custom_call.1} parent=27 // pred_check
          %p229 = pneg %p59
        $region30: #{tpu_custom_call.1} parent=27 // pred_check_branch
          %231 = sbr.rel (%p229) target = $region32
        $region31: #{tpu_custom_call.1} parent=27 // pred_region
          %232 = dma.done %s225, 1920
        $region32: #{tpu_custom_call.1} parent=27 // pred_fallthru
          _
        // Predicated region
        $region33: #{tpu_custom_call.1} parent=27 // pred_check
          %p233 = pneg %p80
        $region34: #{tpu_custom_call.1} parent=27 // pred_check_branch
          %235 = sbr.rel (%p233) target = $region36
        $region35: #{tpu_custom_call.1} parent=27 // pred_region
          %236 = dma.done [#allocation6], 4096
        $region36: #{tpu_custom_call.1} parent=27 // pred_fallthru
          _
        %s237 = sand.u32 %s46, 1
        %s238 = scalar_lea.sflag [#allocation3], %s237
        %s239 = sand.u32 %s46, 1
        %s240 = smul.addr %s239, 120
        %s241 = scalar_lea.vmem [#allocation2], %s240
        %p242 = pneg %p59
        %p243 = pneg %p56
        %p244 = pneg %p80
        %p245 = pneg %p77
        %p246 = pneg %p108
        %p247 = pneg %p105
        %s248 = sand.u32 %s95, 1
        %s249 = scalar_lea.sflag [#allocation4], %s248
        %s250 = sand.u32 %s95, 1
        %s251 = smul.addr %s250, 64
        %s252 = scalar_lea.vmem [#allocation7], %s251
        %p253 = pneg %p136
        %p254 = pneg %p133
        %s255 = sand.u32 %s26, 1
        %s256 = scalar_lea.sflag [#allocation9], %s255
        %s257 = sand.u32 %s123, 1
        %s258 = scalar_lea.vmem [#allocation8], %s257
        %p259 = pneg %p164
        %p260 = pneg %p161
        %s261 = sand.u32 %s26, 1
        %s262 = scalar_lea.sflag [#allocation9], %s261
        %s263 = sand.u32 %s151, 1
        %s264 = scalar_lea.vmem [#allocation10], %s263
        %s266 = smul.addr %s31, 4
        %s267 = scalar_lea.vmem %s228, %s266 [#allocation2]
        %v268 = vld [vmem:[%s267] sm:$0xf]
        %v269 = vld [vmem:[%s267 + $0x4] sm:$0xf]
        %v270 = vld [vmem:[%s267 + $0x8] sm:$0xf]
        %v271 = vld [vmem:[%s267 + $0xc] sm:$0xf]
        %v272 = vld [vmem:[%s267 + $0x10] sm:$0xf]
        %v273 = vld [vmem:[%s267 + $0x14] sm:$0xf]
        %v274 = vld [vmem:[%s267 + $0x18] sm:$0xf]
        %v275 = vld [vmem:[%s267 + $0x1c] sm:$0xf]
        %s276 = smul.u32 %s31, 32
        %s277 = smul.addr %s276, 4
        %s278 = scalar_lea.vmem [#allocation5], %s277
        %v279 = vld [vmem:[%s278] sm:$0xf]
        %v280 = vld [vmem:[%s278 + $0x4] sm:$0xf]
        %v281 = vld [vmem:[%s278 + $0x8] sm:$0xf]
        %v282 = vld [vmem:[%s278 + $0xc] sm:$0xf]
        %s283 = sadd.s32 %s31, 10
        %s284 = smul.addr %s283, 4
        %s285 = scalar_lea.vmem %s228, %s284 [#allocation2]
        %v286 = vld [vmem:[%s285] sm:$0xf]
        %v287 = vld [vmem:[%s285 + $0x4] sm:$0xf]
        %v288 = vld [vmem:[%s285 + $0x8] sm:$0xf]
        %v289 = vld [vmem:[%s285 + $0xc] sm:$0xf]
        %v290 = vld [vmem:[%s285 + $0x10] sm:$0xf]
        %v291 = vld [vmem:[%s285 + $0x14] sm:$0xf]
        %v292 = vld [vmem:[%s285 + $0x18] sm:$0xf]
        %v293 = vld [vmem:[%s285 + $0x1c] sm:$0xf]
        %s294 = sadd.s32 4, %s276
        %s295 = smul.addr %s294, 4
        %s296 = scalar_lea.vmem [#allocation5], %s295
        %v297 = vld [vmem:[%s296] sm:$0xf]
        %v298 = vld [vmem:[%s296 + $0x4] sm:$0xf]
        %v299 = vld [vmem:[%s296 + $0x8] sm:$0xf]
        %v300 = vld [vmem:[%s296 + $0xc] sm:$0xf]
        %v309 = vunpack.c.l.b16 %v286
        %v310 = vunpack.c.l.b16 %v287
        %v311 = vunpack.c.l.b16 %v288
        %v312 = vunpack.c.l.b16 %v289
        %v313 = vunpack.c.l.b16 %v290
        %v314 = vunpack.c.l.b16 %v291
        %v315 = vunpack.c.l.b16 %v292
        %v316 = vunpack.c.l.b16 %v293
        %v317 = vpack.c.b16 %v310, %v309
        %v318 = vpack.c.b16 %v312, %v311
        %v319 = vpack.c.b16 %v314, %v313
        %v320 = vpack.c.b16 %v316, %v315
        %v325 = vunpack.c.l.b16 %v297
        %v326 = vunpack.c.l.b16 %v298
        %v327 = vunpack.c.l.b16 %v299
        %v328 = vunpack.c.l.b16 %v300
        %v329 = vpack.c.b16 %v326, %v325
        %v330 = vpack.c.b16 %v328, %v327
        %vm333 = vcmask 261120
        %v335 = vsel %vm333, %v317, 0
        %v338 = vsel %vm333, %v318, 0
        %v341 = vsel %vm333, %v319, 0
        %v344 = vsel %vm333, %v320, 0
        %346 = vmatprep.subr.bf16.mxu0 0
        %347 = vmatpush1.bf16.msra.mxu0 %v329
        %348 = vmatprep.subr.bf16.mxu0 0
        %349 = vmatpush1.bf16.msra.mxu0 %v330
        %350 = vmatprep.subr.bf16.mxu0 0
        %351 = vmatpush1.bf16.msra.mxu0 0
        %352 = vmatprep.subr.bf16.mxu0 0
        %353 = vmatpush1.bf16.msra.mxu0 0
        %354 = vmatprep.subr.bf16.mxu0 0
        %355 = vmatpush1.bf16.msra.mxu0 0
        %356 = vmatprep.subr.bf16.mxu0 0
        %357 = vmatpush1.bf16.msra.mxu0 0
        %358 = vmatprep.subr.bf16.mxu0 0
        %359 = vmatpush1.bf16.msra.mxu0 0
        %360 = vmatprep.subr.bf16.mxu0 0
        %361 = vmatpush1.bf16.msra.mxu0 0
        %362 = vmatprep.subr.bf16.mxu0 0
        %363 = vmatpush1.bf16.msra.mxu0 0
        %364 = vmatprep.subr.bf16.mxu0 0
        %365 = vmatpush1.bf16.msra.mxu0 0
        %366 = vmatprep.subr.bf16.mxu0 0
        %367 = vmatpush1.bf16.msra.mxu0 0
        %368 = vmatprep.subr.bf16.mxu0 0
        %369 = vmatpush1.bf16.msra.mxu0 0
        %370 = vmatprep.subr.bf16.mxu0 0
        %371 = vmatpush1.bf16.msra.mxu0 0
        %372 = vmatprep.subr.bf16.mxu0 0
        %373 = vmatpush1.bf16.msra.mxu0 0
        %374 = vmatprep.subr.bf16.mxu0 0
        %375 = vmatpush1.bf16.msra.mxu0 0
        %376 = vmatprep.subr.bf16.mxu0 0
        %377 = vmatpush1.bf16.msra.mxu0 0
        %378 = vmatprep.mubr.bf16.mxu0 0
        %379 = vmatmul.mubr.bf16.gmra.mrb[0].mxu0 %v335
        %v380 = vpop.f32.mrb[0].mxu0
        %v381 = vadd.f32 0.0, %v380
        %v382 = vpop.f32.mrb[0].mxu0
        %v383 = vpop.f32.mrb[0].mxu0
        %v384 = vadd.f32 0.0, %v383
        %v385 = vpop.f32.mrb[0].mxu0
        %386 = vmatprep.mubr.bf16.mxu0 0
        %387 = vmatmul.mubr.bf16.gmra.mrb[0].mxu0 %v338
        %v388 = vpop.f32.mrb[0].mxu0
        %v389 = vadd.f32 0.0, %v388
        %v390 = vpop.f32.mrb[0].mxu0
        %v391 = vpop.f32.mrb[0].mxu0
        %v392 = vadd.f32 0.0, %v391
        %v393 = vpop.f32.mrb[0].mxu0
        %394 = vmatprep.mubr.bf16.mxu0 0
        %395 = vmatmul.mubr.bf16.gmra.mrb[0].mxu0 %v341
        %v396 = vpop.f32.mrb[0].mxu0
        %v397 = vadd.f32 0.0, %v396
        %v398 = vpop.f32.mrb[0].mxu0
        %v399 = vpop.f32.mrb[0].mxu0
        %v400 = vadd.f32 0.0, %v399
        %v401 = vpop.f32.mrb[0].mxu0
        %402 = vmatprep.mubr.bf16.mxu0 0
        %403 = vmatmul.mubr.bf16.gmra.mrb[0].mxu0 %v344
        %v404 = vpop.f32.mrb[0].mxu0
        %v405 = vadd.f32 0.0, %v404
        %v406 = vpop.f32.mrb[0].mxu0
        %v407 = vpop.f32.mrb[0].mxu0
        %v408 = vadd.f32 0.0, %v407
        %v409 = vpop.f32.mrb[0].mxu0
        %410 = vdwg.mxu0
        %v419 = vunpack.c.l.b16 %v268
        %v420 = vunpack.c.l.b16 %v269
        %v421 = vunpack.c.l.b16 %v270
        %v422 = vunpack.c.l.b16 %v271
        %v423 = vunpack.c.l.b16 %v272
        %v424 = vunpack.c.l.b16 %v273
        %v425 = vunpack.c.l.b16 %v274
        %v426 = vunpack.c.l.b16 %v275
        %v427 = vpack.c.b16 %v420, %v419
        %v428 = vpack.c.b16 %v422, %v421
        %v429 = vpack.c.b16 %v424, %v423
        %v430 = vpack.c.b16 %v426, %v425
        %v435 = vunpack.c.l.b16 %v279
        %v436 = vunpack.c.l.b16 %v280
        %v437 = vunpack.c.l.b16 %v281
        %v438 = vunpack.c.l.b16 %v282
        %v439 = vpack.c.b16 %v436, %v435
        %v440 = vpack.c.b16 %v438, %v437
        %v444 = vsel %vm333, %v427, 0
        %v447 = vsel %vm333, %v428, 0
        %v450 = vsel %vm333, %v429, 0
        %v453 = vsel %vm333, %v430, 0
        %455 = vmatprep.subr.bf16.mxu0 0
        %456 = vmatpush1.bf16.msra.mxu0 %v439
        %457 = vmatprep.subr.bf16.mxu0 0
        %458 = vmatpush1.bf16.msra.mxu0 %v440
        %459 = vmatprep.subr.bf16.mxu0 0
        %460 = vmatpush1.bf16.msra.mxu0 0
        %461 = vmatprep.subr.bf16.mxu0 0
        %462 = vmatpush1.bf16.msra.mxu0 0
        %463 = vmatprep.subr.bf16.mxu0 0
        %464 = vmatpush1.bf16.msra.mxu0 0
        %465 = vmatprep.subr.bf16.mxu0 0
        %466 = vmatpush1.bf16.msra.mxu0 0
        %467 = vmatprep.subr.bf16.mxu0 0
        %468 = vmatpush1.bf16.msra.mxu0 0
        %469 = vmatprep.subr.bf16.mxu0 0
        %470 = vmatpush1.bf16.msra.mxu0 0
        %471 = vmatprep.subr.bf16.mxu0 0
        %472 = vmatpush1.bf16.msra.mxu0 0
        %473 = vmatprep.subr.bf16.mxu0 0
        %474 = vmatpush1.bf16.msra.mxu0 0
        %475 = vmatprep.subr.bf16.mxu0 0
        %476 = vmatpush1.bf16.msra.mxu0 0
        %477 = vmatprep.subr.bf16.mxu0 0
        %478 = vmatpush1.bf16.msra.mxu0 0
        %479 = vmatprep.subr.bf16.mxu0 0
        %480 = vmatpush1.bf16.msra.mxu0 0
        %481 = vmatprep.subr.bf16.mxu0 0
        %482 = vmatpush1.bf16.msra.mxu0 0
        %483 = vmatprep.subr.bf16.mxu0 0
        %484 = vmatpush1.bf16.msra.mxu0 0
        %485 = vmatprep.subr.bf16.mxu0 0
        %486 = vmatpush1.bf16.msra.mxu0 0
        %487 = vmatprep.mubr.bf16.mxu0 0
        %488 = vmatmul.mubr.bf16.gmra.mrb[0].mxu0 %v444
        %v489 = vpop.f32.mrb[0].mxu0
        %v490 = vadd.f32 %v381, %v489
        %v491 = vpop.f32.mrb[0].mxu0
        %v492 = vpop.f32.mrb[0].mxu0
        %v493 = vadd.f32 %v384, %v492
        %v494 = vpop.f32.mrb[0].mxu0
        %495 = vmatprep.mubr.bf16.mxu0 0
        %496 = vmatmul.mubr.bf16.gmra.mrb[0].mxu0 %v447
        %v497 = vpop.f32.mrb[0].mxu0
        %v498 = vadd.f32 %v389, %v497
        %v499 = vpop.f32.mrb[0].mxu0
        %v500 = vpop.f32.mrb[0].mxu0
        %v501 = vadd.f32 %v392, %v500
        %v502 = vpop.f32.mrb[0].mxu0
        %503 = vmatprep.mubr.bf16.mxu0 0
        %504 = vmatmul.mubr.bf16.gmra.mrb[0].mxu0 %v450
        %v505 = vpop.f32.mrb[0].mxu0
        %v506 = vadd.f32 %v397, %v505
        %v507 = vpop.f32.mrb[0].mxu0
        %v508 = vpop.f32.mrb[0].mxu0
        %v509 = vadd.f32 %v400, %v508
        %v510 = vpop.f32.mrb[0].mxu0
        %511 = vmatprep.mubr.bf16.mxu0 0
        %512 = vmatmul.mubr.bf16.gmra.mrb[0].mxu0 %v453
        %v513 = vpop.f32.mrb[0].mxu0
        %v514 = vadd.f32 %v405, %v513
        %v515 = vpop.f32.mrb[0].mxu0
        %v516 = vpop.f32.mrb[0].mxu0
        %v517 = vadd.f32 %v408, %v516
        %v518 = vpop.f32.mrb[0].mxu0
        %519 = vdwg.mxu0
        %s520 = sadd.s32 %s31, 1
        %s521 = smul.addr %s520, 4
        %s522 = scalar_lea.vmem %s228, %s521 [#allocation2]
        %v523 = vld [vmem:[%s522] sm:$0xf]
        %v524 = vld [vmem:[%s522 + $0x4] sm:$0xf]
        %v525 = vld [vmem:[%s522 + $0x8] sm:$0xf]
        %v526 = vld [vmem:[%s522 + $0xc] sm:$0xf]
        %v527 = vld [vmem:[%s522 + $0x10] sm:$0xf]
        %v528 = vld [vmem:[%s522 + $0x14] sm:$0xf]
        %v529 = vld [vmem:[%s522 + $0x18] sm:$0xf]
        %v530 = vld [vmem:[%s522 + $0x1c] sm:$0xf]
        %s531 = sadd.s32 8, %s276
        %s532 = smul.addr %s531, 4
        %s533 = scalar_lea.vmem [#allocation5], %s532
        %v534 = vld [vmem:[%s533] sm:$0xf]
        %v535 = vld [vmem:[%s533 + $0x4] sm:$0xf]
        %v536 = vld [vmem:[%s533 + $0x8] sm:$0xf]
        %v537 = vld [vmem:[%s533 + $0xc] sm:$0xf]
        %v546 = vunpack.c.l.b16 %v523
        %v547 = vunpack.c.l.b16 %v524
        %v548 = vunpack.c.l.b16 %v525
        %v549 = vunpack.c.l.b16 %v526
        %v550 = vunpack.c.l.b16 %v527
        %v551 = vunpack.c.l.b16 %v528
        %v552 = vunpack.c.l.b16 %v529
        %v553 = vunpack.c.l.b16 %v530
        %v554 = vpack.c.b16 %v547, %v546
        %v555 = vpack.c.b16 %v549, %v548
        %v556 = vpack.c.b16 %v551, %v550
        %v557 = vpack.c.b16 %v553, %v552
        %v562 = vunpack.c.l.b16 %v534
        %v563 = vunpack.c.l.b16 %v535
        %v564 = vunpack.c.l.b16 %v536
        %v565 = vunpack.c.l.b16 %v537
        %v566 = vpack.c.b16 %v563, %v562
        %v567 = vpack.c.b16 %v565, %v564
        %v571 = vsel %vm333, %v554, 0
        %v574 = vsel %vm333, %v555, 0
        %v577 = vsel %vm333, %v556, 0
        %v580 = vsel %vm333, %v557, 0
        %582 = vmatprep.subr.bf16.mxu0 0
        %583 = vmatpush1.bf16.msra.mxu0 %v566
        %584 = vmatprep.subr.bf16.mxu0 0
        %585 = vmatpush1.bf16.msra.mxu0 %v567
        %586 = vmatprep.subr.bf16.mxu0 0
        %587 = vmatpush1.bf16.msra.mxu0 0
        %588 = vmatprep.subr.bf16.mxu0 0
        %589 = vmatpush1.bf16.msra.mxu0 0
        %590 = vmatprep.subr.bf16.mxu0 0
        %591 = vmatpush1.bf16.msra.mxu0 0
        %592 = vmatprep.subr.bf16.mxu0 0
        %593 = vmatpush1.bf16.msra.mxu0 0
        %594 = vmatprep.subr.bf16.mxu0 0
        %595 = vmatpush1.bf16.msra.mxu0 0
        %596 = vmatprep.subr.bf16.mxu0 0
        %597 = vmatpush1.bf16.msra.mxu0 0
        %598 = vmatprep.subr.bf16.mxu0 0
        %599 = vmatpush1.bf16.msra.mxu0 0
        %600 = vmatprep.subr.bf16.mxu0 0
        %601 = vmatpush1.bf16.msra.mxu0 0
        %602 = vmatprep.subr.bf16.mxu0 0
        %603 = vmatpush1.bf16.msra.mxu0 0
        %604 = vmatprep.subr.bf16.mxu0 0
        %605 = vmatpush1.bf16.msra.mxu0 0
        %606 = vmatprep.subr.bf16.mxu0 0
        %607 = vmatpush1.bf16.msra.mxu0 0
        %608 = vmatprep.subr.bf16.mxu0 0
        %609 = vmatpush1.bf16.msra.mxu0 0
        %610 = vmatprep.subr.bf16.mxu0 0
        %611 = vmatpush1.bf16.msra.mxu0 0
        %612 = vmatprep.subr.bf16.mxu0 0
        %613 = vmatpush1.bf16.msra.mxu0 0
        %614 = vmatprep.mubr.bf16.mxu0 0
        %615 = vmatmul.mubr.bf16.gmra.mrb[0].mxu0 %v571
        %v616 = vpop.f32.mrb[0].mxu0
        %v617 = vadd.f32 0.0, %v616
        %v618 = vpop.f32.mrb[0].mxu0
        %v619 = vpop.f32.mrb[0].mxu0
        %v620 = vadd.f32 0.0, %v619
        %v621 = vpop.f32.mrb[0].mxu0
        %622 = vmatprep.mubr.bf16.mxu0 0
        %623 = vmatmul.mubr.bf16.gmra.mrb[0].mxu0 %v574
        %v624 = vpop.f32.mrb[0].mxu0
        %v625 = vadd.f32 0.0, %v624
        %v626 = vpop.f32.mrb[0].mxu0
        %v627 = vpop.f32.mrb[0].mxu0
        %v628 = vadd.f32 0.0, %v627
        %v629 = vpop.f32.mrb[0].mxu0
        %630 = vmatprep.mubr.bf16.mxu0 0
        %631 = vmatmul.mubr.bf16.gmra.mrb[0].mxu0 %v577
        %v632 = vpop.f32.mrb[0].mxu0
        %v633 = vadd.f32 0.0, %v632
        %v634 = vpop.f32.mrb[0].mxu0
        %v635 = vpop.f32.mrb[0].mxu0
        %v636 = vadd.f32 0.0, %v635
        %v637 = vpop.f32.mrb[0].mxu0
        %638 = vmatprep.mubr.bf16.mxu0 0
        %639 = vmatmul.mubr.bf16.gmra.mrb[0].mxu0 %v580
        %v640 = vpop.f32.mrb[0].mxu0
        %v641 = vadd.f32 0.0, %v640
        %v642 = vpop.f32.mrb[0].mxu0
        %v643 = vpop.f32.mrb[0].mxu0
        %v644 = vadd.f32 0.0, %v643
        %v645 = vpop.f32.mrb[0].mxu0
        %646 = vdwg.mxu0
        %v647 = vadd.f32 %v490, %v617
        %v648 = vadd.f32 %v493, %v620
        %v649 = vadd.f32 %v498, %v625
        %v650 = vadd.f32 %v501, %v628
        %v651 = vadd.f32 %v506, %v633
        %v652 = vadd.f32 %v509, %v636
        %v653 = vadd.f32 %v514, %v641
        %v654 = vadd.f32 %v517, %v644
        %s655 = sadd.s32 %s520, 10
        %s656 = smul.addr %s655, 4
        %s657 = scalar_lea.vmem %s228, %s656 [#allocation2]
        %v658 = vld [vmem:[%s657] sm:$0xf]
        %v659 = vld [vmem:[%s657 + $0x4] sm:$0xf]
        %v660 = vld [vmem:[%s657 + $0x8] sm:$0xf]
        %v661 = vld [vmem:[%s657 + $0xc] sm:$0xf]
        %v662 = vld [vmem:[%s657 + $0x10] sm:$0xf]
        %v663 = vld [vmem:[%s657 + $0x14] sm:$0xf]
        %v664 = vld [vmem:[%s657 + $0x18] sm:$0xf]
        %v665 = vld [vmem:[%s657 + $0x1c] sm:$0xf]
        %s666 = sadd.s32 12, %s276
        %s667 = smul.addr %s666, 4
        %s668 = scalar_lea.vmem [#allocation5], %s667
        %v669 = vld [vmem:[%s668] sm:$0xf]
        %v670 = vld [vmem:[%s668 + $0x4] sm:$0xf]
        %v671 = vld [vmem:[%s668 + $0x8] sm:$0xf]
        %v672 = vld [vmem:[%s668 + $0xc] sm:$0xf]
        %v681 = vunpack.c.l.b16 %v658
        %v682 = vunpack.c.l.b16 %v659
        %v683 = vunpack.c.l.b16 %v660
        %v684 = vunpack.c.l.b16 %v661
        %v685 = vunpack.c.l.b16 %v662
        %v686 = vunpack.c.l.b16 %v663
        %v687 = vunpack.c.l.b16 %v664
        %v688 = vunpack.c.l.b16 %v665
        %v689 = vpack.c.b16 %v682, %v681
        %v690 = vpack.c.b16 %v684, %v683
        %v691 = vpack.c.b16 %v686, %v685
        %v692 = vpack.c.b16 %v688, %v687
        %v697 = vunpack.c.l.b16 %v669
        %v698 = vunpack.c.l.b16 %v670
        %v699 = vunpack.c.l.b16 %v671
        %v700 = vunpack.c.l.b16 %v672
        %v701 = vpack.c.b16 %v698, %v697
        %v702 = vpack.c.b16 %v700, %v699
        %v706 = vsel %vm333, %v689, 0
        %v709 = vsel %vm333, %v690, 0
        %v712 = vsel %vm333, %v691, 0
        %v715 = vsel %vm333, %v692, 0
        %717 = vmatprep.subr.bf16.mxu0 0
        %718 = vmatpush1.bf16.msra.mxu0 %v701
        %719 = vmatprep.subr.bf16.mxu0 0
        %720 = vmatpush1.bf16.msra.mxu0 %v702
        %721 = vmatprep.subr.bf16.mxu0 0
        %722 = vmatpush1.bf16.msra.mxu0 0
        %723 = vmatprep.subr.bf16.mxu0 0
        %724 = vmatpush1.bf16.msra.mxu0 0
        %725 = vmatprep.subr.bf16.mxu0 0
        %726 = vmatpush1.bf16.msra.mxu0 0
        %727 = vmatprep.subr.bf16.mxu0 0
        %728 = vmatpush1.bf16.msra.mxu0 0
        %729 = vmatprep.subr.bf16.mxu0 0
        %730 = vmatpush1.bf16.msra.mxu0 0
        %731 = vmatprep.subr.bf16.mxu0 0
        %732 = vmatpush1.bf16.msra.mxu0 0
        %733 = vmatprep.subr.bf16.mxu0 0
        %734 = vmatpush1.bf16.msra.mxu0 0
        %735 = vmatprep.subr.bf16.mxu0 0
        %736 = vmatpush1.bf16.msra.mxu0 0
        %737 = vmatprep.subr.bf16.mxu0 0
        %738 = vmatpush1.bf16.msra.mxu0 0
        %739 = vmatprep.subr.bf16.mxu0 0
        %740 = vmatpush1.bf16.msra.mxu0 0
        %741 = vmatprep.subr.bf16.mxu0 0
        %742 = vmatpush1.bf16.msra.mxu0 0
        %743 = vmatprep.subr.bf16.mxu0 0
        %744 = vmatpush1.bf16.msra.mxu0 0
        %745 = vmatprep.subr.bf16.mxu0 0
        %746 = vmatpush1.bf16.msra.mxu0 0
        %747 = vmatprep.subr.bf16.mxu0 0
        %748 = vmatpush1.bf16.msra.mxu0 0
        %749 = vmatprep.mubr.bf16.mxu0 0
        %750 = vmatmul.mubr.bf16.gmra.mrb[0].mxu0 %v706
        %v751 = vpop.f32.mrb[0].mxu0
        %v752 = vadd.f32 0.0, %v751
        %v753 = vpop.f32.mrb[0].mxu0
        %v754 = vpop.f32.mrb[0].mxu0
        %v755 = vadd.f32 0.0, %v754
        %v756 = vpop.f32.mrb[0].mxu0
        %757 = vmatprep.mubr.bf16.mxu0 0
        %758 = vmatmul.mubr.bf16.gmra.mrb[0].mxu0 %v709
        %v759 = vpop.f32.mrb[0].mxu0
        %v760 = vadd.f32 0.0, %v759
        %v761 = vpop.f32.mrb[0].mxu0
        %v762 = vpop.f32.mrb[0].mxu0
        %v763 = vadd.f32 0.0, %v762
        %v764 = vpop.f32.mrb[0].mxu0
        %765 = vmatprep.mubr.bf16.mxu0 0
        %766 = vmatmul.mubr.bf16.gmra.mrb[0].mxu0 %v712
        %v767 = vpop.f32.mrb[0].mxu0
        %v768 = vadd.f32 0.0, %v767
        %v769 = vpop.f32.mrb[0].mxu0
        %v770 = vpop.f32.mrb[0].mxu0
        %v771 = vadd.f32 0.0, %v770
        %v772 = vpop.f32.mrb[0].mxu0
        %773 = vmatprep.mubr.bf16.mxu0 0
        %774 = vmatmul.mubr.bf16.gmra.mrb[0].mxu0 %v715
        %v775 = vpop.f32.mrb[0].mxu0
        %v776 = vadd.f32 0.0, %v775
        %v777 = vpop.f32.mrb[0].mxu0
        %v778 = vpop.f32.mrb[0].mxu0
        %v779 = vadd.f32 0.0, %v778
        %v780 = vpop.f32.mrb[0].mxu0
        %781 = vdwg.mxu0
        %v782 = vadd.f32 %v647, %v752
        %v783 = vadd.f32 %v648, %v755
        %v784 = vadd.f32 %v649, %v760
        %v785 = vadd.f32 %v650, %v763
        %v786 = vadd.f32 %v651, %v768
        %v787 = vadd.f32 %v652, %v771
        %v788 = vadd.f32 %v653, %v776
        %v789 = vadd.f32 %v654, %v779
        %v790 = vadd.f32 %v782, %v783
        %v791 = vadd.f32 %v790, %v784
        %v792 = vadd.f32 %v791, %v785
        %v793 = vadd.f32 %v792, %v786
        %v794 = vadd.f32 %v793, %v787
        %v795 = vadd.f32 %v794, %v788
        %v796 = vadd.f32 %v795, %v789
        %v797 = vrot.slane %v796, 4
        %v798 = vadd.f32 %v796, %v797
        %v799 = vrot.slane %v798, 2
        %v800 = vadd.f32 %v798, %v799
        %v801 = vrot.slane %v800, 1
        %v802 = vadd.f32 %v800, %v801
        %v803 = vadd.f32 %v802, 0.0
        %v804 = vmul.f32 %v782, %v782
        %v805 = vmul.f32 %v783, %v783
        %v806 = vmul.f32 %v784, %v784
        %v807 = vmul.f32 %v785, %v785
        %v808 = vmul.f32 %v786, %v786
        %v809 = vmul.f32 %v787, %v787
        %v810 = vmul.f32 %v788, %v788
        %v811 = vmul.f32 %v789, %v789
        %v812 = vadd.f32 %v804, %v805
        %v813 = vadd.f32 %v812, %v806
        %v814 = vadd.f32 %v813, %v807
        %v815 = vadd.f32 %v814, %v808
        %v816 = vadd.f32 %v815, %v809
        %v817 = vadd.f32 %v816, %v810
        %v818 = vadd.f32 %v817, %v811
        %v819 = vrot.slane %v818, 4
        %v820 = vadd.f32 %v818, %v819
        %v821 = vrot.slane %v820, 2
        %v822 = vadd.f32 %v820, %v821
        %v823 = vrot.slane %v822, 1
        %v824 = vadd.f32 %v822, %v823
        %v825 = vadd.f32 %v824, 0.0
        %v826 = vpack.c.bf16 %v782, %v782
        %v827 = vpack.c.bf16 %v783, %v783
        %v828 = vpack.c.bf16 %v784, %v784
        %v829 = vpack.c.bf16 %v785, %v785
        %v830 = vpack.c.bf16 %v786, %v786
        %v831 = vpack.c.bf16 %v787, %v787
        %v832 = vpack.c.bf16 %v788, %v788
        %v833 = vpack.c.bf16 %v789, %v789
        %834 = vst [vmem:[%s252] sm:$0xf] %v826
        %835 = vst [vmem:[%s252 + $0x8] sm:$0xf] %v827
        %836 = vst [vmem:[%s252 + $0x10] sm:$0xf] %v828
        %837 = vst [vmem:[%s252 + $0x18] sm:$0xf] %v829
        %838 = vst [vmem:[%s252 + $0x20] sm:$0xf] %v830
        %839 = vst [vmem:[%s252 + $0x28] sm:$0xf] %v831
        %840 = vst [vmem:[%s252 + $0x30] sm:$0xf] %v832
        %841 = vst [vmem:[%s252 + $0x38] sm:$0xf] %v833
        %v842 = vld [vmem:[%s285] sm:$0xf]
        %v843 = vld [vmem:[%s285 + $0x4] sm:$0xf]
        %v844 = vld [vmem:[%s285 + $0x8] sm:$0xf]
        %v845 = vld [vmem:[%s285 + $0xc] sm:$0xf]
        %v846 = vld [vmem:[%s285 + $0x10] sm:$0xf]
        %v847 = vld [vmem:[%s285 + $0x14] sm:$0xf]
        %v848 = vld [vmem:[%s285 + $0x18] sm:$0xf]
        %v849 = vld [vmem:[%s285 + $0x1c] sm:$0xf]
        %s850 = sadd.s32 16, %s276
        %s851 = smul.addr %s850, 4
        %s852 = scalar_lea.vmem [#allocation5], %s851
        %v853 = vld [vmem:[%s852] sm:$0xf]
        %v854 = vld [vmem:[%s852 + $0x4] sm:$0xf]
        %v855 = vld [vmem:[%s852 + $0x8] sm:$0xf]
        %v856 = vld [vmem:[%s852 + $0xc] sm:$0xf]
        %s857 = sadd.s32 %s31, 20
        %s858 = smul.addr %s857, 4
        %s859 = scalar_lea.vmem %s228, %s858 [#allocation2]
        %v860 = vld [vmem:[%s859] sm:$0xf]
        %v861 = vld [vmem:[%s859 + $0x4] sm:$0xf]
        %v862 = vld [vmem:[%s859 + $0x8] sm:$0xf]
        %v863 = vld [vmem:[%s859 + $0xc] sm:$0xf]
        %v864 = vld [vmem:[%s859 + $0x10] sm:$0xf]
        %v865 = vld [vmem:[%s859 + $0x14] sm:$0xf]
        %v866 = vld [vmem:[%s859 + $0x18] sm:$0xf]
        %v867 = vld [vmem:[%s859 + $0x1c] sm:$0xf]
        %s868 = sadd.s32 20, %s276
        %s869 = smul.addr %s868, 4
        %s870 = scalar_lea.vmem [#allocation5], %s869
        %v871 = vld [vmem:[%s870] sm:$0xf]
        %v872 = vld [vmem:[%s870 + $0x4] sm:$0xf]
        %v873 = vld [vmem:[%s870 + $0x8] sm:$0xf]
        %v874 = vld [vmem:[%s870 + $0xc] sm:$0xf]
        %v883 = vunpack.c.l.b16 %v860
        %v884 = vunpack.c.l.b16 %v861
        %v885 = vunpack.c.l.b16 %v862
        %v886 = vunpack.c.l.b16 %v863
        %v887 = vunpack.c.l.b16 %v864
        %v888 = vunpack.c.l.b16 %v865
        %v889 = vunpack.c.l.b16 %v866
        %v890 = vunpack.c.l.b16 %v867
        %v891 = vpack.c.b16 %v884, %v883
        %v892 = vpack.c.b16 %v886, %v885
        %v893 = vpack.c.b16 %v888, %v887
        %v894 = vpack.c.b16 %v890, %v889
        %v899 = vunpack.c.l.b16 %v871
        %v900 = vunpack.c.l.b16 %v872
        %v901 = vunpack.c.l.b16 %v873
        %v902 = vunpack.c.l.b16 %v874
        %v903 = vpack.c.b16 %v900, %v899
        %v904 = vpack.c.b16 %v902, %v901
        %v908 = vsel %vm333, %v891, 0
        %v911 = vsel %vm333, %v892, 0
        %v914 = vsel %vm333, %v893, 0
        %v917 = vsel %vm333, %v894, 0
        %919 = vmatprep.subr.bf16.mxu0 0
        %920 = vmatpush1.bf16.msra.mxu0 %v903
        %921 = vmatprep.subr.bf16.mxu0 0
        %922 = vmatpush1.bf16.msra.mxu0 %v904
        %923 = vmatprep.subr.bf16.mxu0 0
        %924 = vmatpush1.bf16.msra.mxu0 0
        %925 = vmatprep.subr.bf16.mxu0 0
        %926 = vmatpush1.bf16.msra.mxu0 0
        %927 = vmatprep.subr.bf16.mxu0 0
        %928 = vmatpush1.bf16.msra.mxu0 0
        %929 = vmatprep.subr.bf16.mxu0 0
        %930 = vmatpush1.bf16.msra.mxu0 0
        %931 = vmatprep.subr.bf16.mxu0 0
        %932 = vmatpush1.bf16.msra.mxu0 0
        %933 = vmatprep.subr.bf16.mxu0 0
        %934 = vmatpush1.bf16.msra.mxu0 0
        %935 = vmatprep.subr.bf16.mxu0 0
        %936 = vmatpush1.bf16.msra.mxu0 0
        %937 = vmatprep.subr.bf16.mxu0 0
        %938 = vmatpush1.bf16.msra.mxu0 0
        %939 = vmatprep.subr.bf16.mxu0 0
        %940 = vmatpush1.bf16.msra.mxu0 0
        %941 = vmatprep.subr.bf16.mxu0 0
        %942 = vmatpush1.bf16.msra.mxu0 0
        %943 = vmatprep.subr.bf16.mxu0 0
        %944 = vmatpush1.bf16.msra.mxu0 0
        %945 = vmatprep.subr.bf16.mxu0 0
        %946 = vmatpush1.bf16.msra.mxu0 0
        %947 = vmatprep.subr.bf16.mxu0 0
        %948 = vmatpush1.bf16.msra.mxu0 0
        %949 = vmatprep.subr.bf16.mxu0 0
        %950 = vmatpush1.bf16.msra.mxu0 0
        %951 = vmatprep.mubr.bf16.mxu0 0
        %952 = vmatmul.mubr.bf16.gmra.mrb[0].mxu0 %v908
        %v953 = vpop.f32.mrb[0].mxu0
        %v954 = vadd.f32 0.0, %v953
        %v955 = vpop.f32.mrb[0].mxu0
        %v956 = vpop.f32.mrb[0].mxu0
        %v957 = vadd.f32 0.0, %v956
        %v958 = vpop.f32.mrb[0].mxu0
        %959 = vmatprep.mubr.bf16.mxu0 0
        %960 = vmatmul.mubr.bf16.gmra.mrb[0].mxu0 %v911
        %v961 = vpop.f32.mrb[0].mxu0
        %v962 = vadd.f32 0.0, %v961
        %v963 = vpop.f32.mrb[0].mxu0
        %v964 = vpop.f32.mrb[0].mxu0
        %v965 = vadd.f32 0.0, %v964
        %v966 = vpop.f32.mrb[0].mxu0
        %967 = vmatprep.mubr.bf16.mxu0 0
        %968 = vmatmul.mubr.bf16.gmra.mrb[0].mxu0 %v914
        %v969 = vpop.f32.mrb[0].mxu0
        %v970 = vadd.f32 0.0, %v969
        %v971 = vpop.f32.mrb[0].mxu0
        %v972 = vpop.f32.mrb[0].mxu0
        %v973 = vadd.f32 0.0, %v972
        %v974 = vpop.f32.mrb[0].mxu0
        %975 = vmatprep.mubr.bf16.mxu0 0
        %976 = vmatmul.mubr.bf16.gmra.mrb[0].mxu0 %v917
        %v977 = vpop.f32.mrb[0].mxu0
        %v978 = vadd.f32 0.0, %v977
        %v979 = vpop.f32.mrb[0].mxu0
        %v980 = vpop.f32.mrb[0].mxu0
        %v981 = vadd.f32 0.0, %v980
        %v982 = vpop.f32.mrb[0].mxu0
        %983 = vdwg.mxu0
        %v992 = vunpack.c.l.b16 %v842
        %v993 = vunpack.c.l.b16 %v843
        %v994 = vunpack.c.l.b16 %v844
        %v995 = vunpack.c.l.b16 %v845
        %v996 = vunpack.c.l.b16 %v846
        %v997 = vunpack.c.l.b16 %v847
        %v998 = vunpack.c.l.b16 %v848
        %v999 = vunpack.c.l.b16 %v849
        %v1000 = vpack.c.b16 %v993, %v992
        %v1001 = vpack.c.b16 %v995, %v994
        %v1002 = vpack.c.b16 %v997, %v996
        %v1003 = vpack.c.b16 %v999, %v998
        %v1008 = vunpack.c.l.b16 %v853
        %v1009 = vunpack.c.l.b16 %v854
        %v1010 = vunpack.c.l.b16 %v855
        %v1011 = vunpack.c.l.b16 %v856
        %v1012 = vpack.c.b16 %v1009, %v1008
        %v1013 = vpack.c.b16 %v1011, %v1010
        %v1017 = vsel %vm333, %v1000, 0
        %v1020 = vsel %vm333, %v1001, 0
        %v1023 = vsel %vm333, %v1002, 0
        %v1026 = vsel %vm333, %v1003, 0
        %1028 = vmatprep.subr.bf16.mxu0 0
        %1029 = vmatpush1.bf16.msra.mxu0 %v1012
        %1030 = vmatprep.subr.bf16.mxu0 0
        %1031 = vmatpush1.bf16.msra.mxu0 %v1013
        %1032 = vmatprep.subr.bf16.mxu0 0
        %1033 = vmatpush1.bf16.msra.mxu0 0
        %1034 = vmatprep.subr.bf16.mxu0 0
        %1035 = vmatpush1.bf16.msra.mxu0 0
        %1036 = vmatprep.subr.bf16.mxu0 0
        %1037 = vmatpush1.bf16.msra.mxu0 0
        %1038 = vmatprep.subr.bf16.mxu0 0
        %1039 = vmatpush1.bf16.msra.mxu0 0
        %1040 = vmatprep.subr.bf16.mxu0 0
        %1041 = vmatpush1.bf16.msra.mxu0 0
        %1042 = vmatprep.subr.bf16.mxu0 0
        %1043 = vmatpush1.bf16.msra.mxu0 0
        %1044 = vmatprep.subr.bf16.mxu0 0
        %1045 = vmatpush1.bf16.msra.mxu0 0
        %1046 = vmatprep.subr.bf16.mxu0 0
        %1047 = vmatpush1.bf16.msra.mxu0 0
        %1048 = vmatprep.subr.bf16.mxu0 0
        %1049 = vmatpush1.bf16.msra.mxu0 0
        %1050 = vmatprep.subr.bf16.mxu0 0
        %1051 = vmatpush1.bf16.msra.mxu0 0
        %1052 = vmatprep.subr.bf16.mxu0 0
        %1053 = vmatpush1.bf16.msra.mxu0 0
        %1054 = vmatprep.subr.bf16.mxu0 0
        %1055 = vmatpush1.bf16.msra.mxu0 0
        %1056 = vmatprep.subr.bf16.mxu0 0
        %1057 = vmatpush1.bf16.msra.mxu0 0
        %1058 = vmatprep.subr.bf16.mxu0 0
        %1059 = vmatpush1.bf16.msra.mxu0 0
        %1060 = vmatprep.mubr.bf16.mxu0 0
        %1061 = vmatmul.mubr.bf16.gmra.mrb[0].mxu0 %v1017
        %v1062 = vpop.f32.mrb[0].mxu0
        %v1063 = vadd.f32 %v954, %v1062
        %v1064 = vpop.f32.mrb[0].mxu0
        %v1065 = vpop.f32.mrb[0].mxu0
        %v1066 = vadd.f32 %v957, %v1065
        %v1067 = vpop.f32.mrb[0].mxu0
        %1068 = vmatprep.mubr.bf16.mxu0 0
        %1069 = vmatmul.mubr.bf16.gmra.mrb[0].mxu0 %v1020
        %v1070 = vpop.f32.mrb[0].mxu0
        %v1071 = vadd.f32 %v962, %v1070
        %v1072 = vpop.f32.mrb[0].mxu0
        %v1073 = vpop.f32.mrb[0].mxu0
        %v1074 = vadd.f32 %v965, %v1073
        %v1075 = vpop.f32.mrb[0].mxu0
        %1076 = vmatprep.mubr.bf16.mxu0 0
        %1077 = vmatmul.mubr.bf16.gmra.mrb[0].mxu0 %v1023
        %v1078 = vpop.f32.mrb[0].mxu0
        %v1079 = vadd.f32 %v970, %v1078
        %v1080 = vpop.f32.mrb[0].mxu0
        %v1081 = vpop.f32.mrb[0].mxu0
        %v1082 = vadd.f32 %v973, %v1081
        %v1083 = vpop.f32.mrb[0].mxu0
        %1084 = vmatprep.mubr.bf16.mxu0 0
        %1085 = vmatmul.mubr.bf16.gmra.mrb[0].mxu0 %v1026
        %v1086 = vpop.f32.mrb[0].mxu0
        %v1087 = vadd.f32 %v978, %v1086
        %v1088 = vpop.f32.mrb[0].mxu0
        %v1089 = vpop.f32.mrb[0].mxu0
        %v1090 = vadd.f32 %v981, %v1089
        %v1091 = vpop.f32.mrb[0].mxu0
        %1092 = vdwg.mxu0
        %v1093 = vld [vmem:[%s657] sm:$0xf]
        %v1094 = vld [vmem:[%s657 + $0x4] sm:$0xf]
        %v1095 = vld [vmem:[%s657 + $0x8] sm:$0xf]
        %v1096 = vld [vmem:[%s657 + $0xc] sm:$0xf]
        %v1097 = vld [vmem:[%s657 + $0x10] sm:$0xf]
        %v1098 = vld [vmem:[%s657 + $0x14] sm:$0xf]
        %v1099 = vld [vmem:[%s657 + $0x18] sm:$0xf]
        %v1100 = vld [vmem:[%s657 + $0x1c] sm:$0xf]
        %s1101 = sadd.s32 24, %s276
        %s1102 = smul.addr %s1101, 4
        %s1103 = scalar_lea.vmem [#allocation5], %s1102
        %v1104 = vld [vmem:[%s1103] sm:$0xf]
        %v1105 = vld [vmem:[%s1103 + $0x4] sm:$0xf]
        %v1106 = vld [vmem:[%s1103 + $0x8] sm:$0xf]
        %v1107 = vld [vmem:[%s1103 + $0xc] sm:$0xf]
        %v1116 = vunpack.c.l.b16 %v1093
        %v1117 = vunpack.c.l.b16 %v1094
        %v1118 = vunpack.c.l.b16 %v1095
        %v1119 = vunpack.c.l.b16 %v1096
        %v1120 = vunpack.c.l.b16 %v1097
        %v1121 = vunpack.c.l.b16 %v1098
        %v1122 = vunpack.c.l.b16 %v1099
        %v1123 = vunpack.c.l.b16 %v1100
        %v1124 = vpack.c.b16 %v1117, %v1116
        %v1125 = vpack.c.b16 %v1119, %v1118
        %v1126 = vpack.c.b16 %v1121, %v1120
        %v1127 = vpack.c.b16 %v1123, %v1122
        %v1132 = vunpack.c.l.b16 %v1104
        %v1133 = vunpack.c.l.b16 %v1105
        %v1134 = vunpack.c.l.b16 %v1106
        %v1135 = vunpack.c.l.b16 %v1107
        %v1136 = vpack.c.b16 %v1133, %v1132
        %v1137 = vpack.c.b16 %v1135, %v1134
        %v1141 = vsel %vm333, %v1124, 0
        %v1144 = vsel %vm333, %v1125, 0
        %v1147 = vsel %vm333, %v1126, 0
        %v1150 = vsel %vm333, %v1127, 0
        %1152 = vmatprep.subr.bf16.mxu0 0
        %1153 = vmatpush1.bf16.msra.mxu0 %v1136
        %1154 = vmatprep.subr.bf16.mxu0 0
        %1155 = vmatpush1.bf16.msra.mxu0 %v1137
        %1156 = vmatprep.subr.bf16.mxu0 0
        %1157 = vmatpush1.bf16.msra.mxu0 0
        %1158 = vmatprep.subr.bf16.mxu0 0
        %1159 = vmatpush1.bf16.msra.mxu0 0
        %1160 = vmatprep.subr.bf16.mxu0 0
        %1161 = vmatpush1.bf16.msra.mxu0 0
        %1162 = vmatprep.subr.bf16.mxu0 0
        %1163 = vmatpush1.bf16.msra.mxu0 0
        %1164 = vmatprep.subr.bf16.mxu0 0
        %1165 = vmatpush1.bf16.msra.mxu0 0
        %1166 = vmatprep.subr.bf16.mxu0 0
        %1167 = vmatpush1.bf16.msra.mxu0 0
        %1168 = vmatprep.subr.bf16.mxu0 0
        %1169 = vmatpush1.bf16.msra.mxu0 0
        %1170 = vmatprep.subr.bf16.mxu0 0
        %1171 = vmatpush1.bf16.msra.mxu0 0
        %1172 = vmatprep.subr.bf16.mxu0 0
        %1173 = vmatpush1.bf16.msra.mxu0 0
        %1174 = vmatprep.subr.bf16.mxu0 0
        %1175 = vmatpush1.bf16.msra.mxu0 0
        %1176 = vmatprep.subr.bf16.mxu0 0
        %1177 = vmatpush1.bf16.msra.mxu0 0
        %1178 = vmatprep.subr.bf16.mxu0 0
        %1179 = vmatpush1.bf16.msra.mxu0 0
        %1180 = vmatprep.subr.bf16.mxu0 0
        %1181 = vmatpush1.bf16.msra.mxu0 0
        %1182 = vmatprep.subr.bf16.mxu0 0
        %1183 = vmatpush1.bf16.msra.mxu0 0
        %1184 = vmatprep.mubr.bf16.mxu0 0
        %1185 = vmatmul.mubr.bf16.gmra.mrb[0].mxu0 %v1141
        %v1186 = vpop.f32.mrb[0].mxu0
        %v1187 = vadd.f32 0.0, %v1186
        %v1188 = vpop.f32.mrb[0].mxu0
        %v1189 = vpop.f32.mrb[0].mxu0
        %v1190 = vadd.f32 0.0, %v1189
        %v1191 = vpop.f32.mrb[0].mxu0
        %1192 = vmatprep.mubr.bf16.mxu0 0
        %1193 = vmatmul.mubr.bf16.gmra.mrb[0].mxu0 %v1144
        %v1194 = vpop.f32.mrb[0].mxu0
        %v1195 = vadd.f32 0.0, %v1194
        %v1196 = vpop.f32.mrb[0].mxu0
        %v1197 = vpop.f32.mrb[0].mxu0
        %v1198 = vadd.f32 0.0, %v1197
        %v1199 = vpop.f32.mrb[0].mxu0
        %1200 = vmatprep.mubr.bf16.mxu0 0
        %1201 = vmatmul.mubr.bf16.gmra.mrb[0].mxu0 %v1147
        %v1202 = vpop.f32.mrb[0].mxu0
        %v1203 = vadd.f32 0.0, %v1202
        %v1204 = vpop.f32.mrb[0].mxu0
        %v1205 = vpop.f32.mrb[0].mxu0
        %v1206 = vadd.f32 0.0, %v1205
        %v1207 = vpop.f32.mrb[0].mxu0
        %1208 = vmatprep.mubr.bf16.mxu0 0
        %1209 = vmatmul.mubr.bf16.gmra.mrb[0].mxu0 %v1150
        %v1210 = vpop.f32.mrb[0].mxu0
        %v1211 = vadd.f32 0.0, %v1210
        %v1212 = vpop.f32.mrb[0].mxu0
        %v1213 = vpop.f32.mrb[0].mxu0
        %v1214 = vadd.f32 0.0, %v1213
        %v1215 = vpop.f32.mrb[0].mxu0
        %1216 = vdwg.mxu0
        %v1217 = vadd.f32 %v1063, %v1187
        %v1218 = vadd.f32 %v1066, %v1190
        %v1219 = vadd.f32 %v1071, %v1195
        %v1220 = vadd.f32 %v1074, %v1198
        %v1221 = vadd.f32 %v1079, %v1203
        %v1222 = vadd.f32 %v1082, %v1206
        %v1223 = vadd.f32 %v1087, %v1211
        %v1224 = vadd.f32 %v1090, %v1214
        %s1225 = sadd.s32 %s520, 20
        %s1226 = smul.addr %s1225, 4
        %s1227 = scalar_lea.vmem %s228, %s1226 [#allocation2]
        %v1228 = vld [vmem:[%s1227] sm:$0xf]
        %v1229 = vld [vmem:[%s1227 + $0x4] sm:$0xf]
        %v1230 = vld [vmem:[%s1227 + $0x8] sm:$0xf]
        %v1231 = vld [vmem:[%s1227 + $0xc] sm:$0xf]
        %v1232 = vld [vmem:[%s1227 + $0x10] sm:$0xf]
        %v1233 = vld [vmem:[%s1227 + $0x14] sm:$0xf]
        %v1234 = vld [vmem:[%s1227 + $0x18] sm:$0xf]
        %v1235 = vld [vmem:[%s1227 + $0x1c] sm:$0xf]
        %s1236 = sadd.s32 28, %s276
        %s1237 = smul.addr %s1236, 4
        %s1238 = scalar_lea.vmem [#allocation5], %s1237
        %v1239 = vld [vmem:[%s1238] sm:$0xf]
        %v1240 = vld [vmem:[%s1238 + $0x4] sm:$0xf]
        %v1241 = vld [vmem:[%s1238 + $0x8] sm:$0xf]
        %v1242 = vld [vmem:[%s1238 + $0xc] sm:$0xf]
        %v1251 = vunpack.c.l.b16 %v1228
        %v1252 = vunpack.c.l.b16 %v1229
        %v1253 = vunpack.c.l.b16 %v1230
        %v1254 = vunpack.c.l.b16 %v1231
        %v1255 = vunpack.c.l.b16 %v1232
        %v1256 = vunpack.c.l.b16 %v1233
        %v1257 = vunpack.c.l.b16 %v1234
        %v1258 = vunpack.c.l.b16 %v1235
        %v1259 = vpack.c.b16 %v1252, %v1251
        %v1260 = vpack.c.b16 %v1254, %v1253
        %v1261 = vpack.c.b16 %v1256, %v1255
        %v1262 = vpack.c.b16 %v1258, %v1257
        %v1267 = vunpack.c.l.b16 %v1239
        %v1268 = vunpack.c.l.b16 %v1240
        %v1269 = vunpack.c.l.b16 %v1241
        %v1270 = vunpack.c.l.b16 %v1242
        %v1271 = vpack.c.b16 %v1268, %v1267
        %v1272 = vpack.c.b16 %v1270, %v1269
        %v1276 = vsel %vm333, %v1259, 0
        %v1279 = vsel %vm333, %v1260, 0
        %v1282 = vsel %vm333, %v1261, 0
        %v1285 = vsel %vm333, %v1262, 0
        %1287 = vmatprep.subr.bf16.mxu0 0
        %1288 = vmatpush1.bf16.msra.mxu0 %v1271
        %1289 = vmatprep.subr.bf16.mxu0 0
        %1290 = vmatpush1.bf16.msra.mxu0 %v1272
        %1291 = vmatprep.subr.bf16.mxu0 0
        %1292 = vmatpush1.bf16.msra.mxu0 0
        %1293 = vmatprep.subr.bf16.mxu0 0
        %1294 = vmatpush1.bf16.msra.mxu0 0
        %1295 = vmatprep.subr.bf16.mxu0 0
        %1296 = vmatpush1.bf16.msra.mxu0 0
        %1297 = vmatprep.subr.bf16.mxu0 0
        %1298 = vmatpush1.bf16.msra.mxu0 0
        %1299 = vmatprep.subr.bf16.mxu0 0
        %1300 = vmatpush1.bf16.msra.mxu0 0
        %1301 = vmatprep.subr.bf16.mxu0 0
        %1302 = vmatpush1.bf16.msra.mxu0 0
        %1303 = vmatprep.subr.bf16.mxu0 0
        %1304 = vmatpush1.bf16.msra.mxu0 0
        %1305 = vmatprep.subr.bf16.mxu0 0
        %1306 = vmatpush1.bf16.msra.mxu0 0
        %1307 = vmatprep.subr.bf16.mxu0 0
        %1308 = vmatpush1.bf16.msra.mxu0 0
        %1309 = vmatprep.subr.bf16.mxu0 0
        %1310 = vmatpush1.bf16.msra.mxu0 0
        %1311 = vmatprep.subr.bf16.mxu0 0
        %1312 = vmatpush1.bf16.msra.mxu0 0
        %1313 = vmatprep.subr.bf16.mxu0 0
        %1314 = vmatpush1.bf16.msra.mxu0 0
        %1315 = vmatprep.subr.bf16.mxu0 0
        %1316 = vmatpush1.bf16.msra.mxu0 0
        %1317 = vmatprep.subr.bf16.mxu0 0
        %1318 = vmatpush1.bf16.msra.mxu0 0
        %1319 = vmatprep.mubr.bf16.mxu0 0
        %1320 = vmatmul.mubr.bf16.gmra.mrb[0].mxu0 %v1276
        %v1321 = vpop.f32.mrb[0].mxu0
        %v1322 = vadd.f32 0.0, %v1321
        %v1323 = vpop.f32.mrb[0].mxu0
        %v1324 = vpop.f32.mrb[0].mxu0
        %v1325 = vadd.f32 0.0, %v1324
        %v1326 = vpop.f32.mrb[0].mxu0
        %1327 = vmatprep.mubr.bf16.mxu0 0
        %1328 = vmatmul.mubr.bf16.gmra.mrb[0].mxu0 %v1279
        %v1329 = vpop.f32.mrb[0].mxu0
        %v1330 = vadd.f32 0.0, %v1329
        %v1331 = vpop.f32.mrb[0].mxu0
        %v1332 = vpop.f32.mrb[0].mxu0
        %v1333 = vadd.f32 0.0, %v1332
        %v1334 = vpop.f32.mrb[0].mxu0
        %1335 = vmatprep.mubr.bf16.mxu0 0
        %1336 = vmatmul.mubr.bf16.gmra.mrb[0].mxu0 %v1282
        %v1337 = vpop.f32.mrb[0].mxu0
        %v1338 = vadd.f32 0.0, %v1337
        %v1339 = vpop.f32.mrb[0].mxu0
        %v1340 = vpop.f32.mrb[0].mxu0
        %v1341 = vadd.f32 0.0, %v1340
        %v1342 = vpop.f32.mrb[0].mxu0
        %1343 = vmatprep.mubr.bf16.mxu0 0
        %1344 = vmatmul.mubr.bf16.gmra.mrb[0].mxu0 %v1285
        %v1345 = vpop.f32.mrb[0].mxu0
        %v1346 = vadd.f32 0.0, %v1345
        %v1347 = vpop.f32.mrb[0].mxu0
        %v1348 = vpop.f32.mrb[0].mxu0
        %v1349 = vadd.f32 0.0, %v1348
        %v1350 = vpop.f32.mrb[0].mxu0
        %1351 = vdwg.mxu0
        %v1352 = vadd.f32 %v1217, %v1322
        %v1353 = vadd.f32 %v1218, %v1325
        %v1354 = vadd.f32 %v1219, %v1330
        %v1355 = vadd.f32 %v1220, %v1333
        %v1356 = vadd.f32 %v1221, %v1338
        %v1357 = vadd.f32 %v1222, %v1341
        %v1358 = vadd.f32 %v1223, %v1346
        %v1359 = vadd.f32 %v1224, %v1349
        %v1360 = vadd.f32 %v1352, %v1353
        %v1361 = vadd.f32 %v1360, %v1354
        %v1362 = vadd.f32 %v1361, %v1355
        %v1363 = vadd.f32 %v1362, %v1356
        %v1364 = vadd.f32 %v1363, %v1357
        %v1365 = vadd.f32 %v1364, %v1358
        %v1366 = vadd.f32 %v1365, %v1359
        %v1367 = vrot.slane %v1366, 4
        %v1368 = vadd.f32 %v1366, %v1367
        %v1369 = vrot.slane %v1368, 2
        %v1370 = vadd.f32 %v1368, %v1369
        %v1371 = vrot.slane %v1370, 1
        %v1372 = vadd.f32 %v1370, %v1371
        %v1373 = vadd.f32 %v803, %v1372
        %v1374 = vmul.f32 %v1352, %v1352
        %v1375 = vmul.f32 %v1353, %v1353
        %v1376 = vmul.f32 %v1354, %v1354
        %v1377 = vmul.f32 %v1355, %v1355
        %v1378 = vmul.f32 %v1356, %v1356
        %v1379 = vmul.f32 %v1357, %v1357
        %v1380 = vmul.f32 %v1358, %v1358
        %v1381 = vmul.f32 %v1359, %v1359
        %v1382 = vadd.f32 %v1374, %v1375
        %v1383 = vadd.f32 %v1382, %v1376
        %v1384 = vadd.f32 %v1383, %v1377
        %v1385 = vadd.f32 %v1384, %v1378
        %v1386 = vadd.f32 %v1385, %v1379
        %v1387 = vadd.f32 %v1386, %v1380
        %v1388 = vadd.f32 %v1387, %v1381
        %v1389 = vrot.slane %v1388, 4
        %v1390 = vadd.f32 %v1388, %v1389
        %v1391 = vrot.slane %v1390, 2
        %v1392 = vadd.f32 %v1390, %v1391
        %v1393 = vrot.slane %v1392, 1
        %v1394 = vadd.f32 %v1392, %v1393
        %v1395 = vadd.f32 %v825, %v1394
        %v1396 = vpack.c.bf16 %v1352, %v1352
        %v1397 = vpack.c.bf16 %v1353, %v1353
        %v1398 = vpack.c.bf16 %v1354, %v1354
        %v1399 = vpack.c.bf16 %v1355, %v1355
        %v1400 = vpack.c.bf16 %v1356, %v1356
        %v1401 = vpack.c.bf16 %v1357, %v1357
        %v1402 = vpack.c.bf16 %v1358, %v1358
        %v1403 = vpack.c.bf16 %v1359, %v1359
        %1404 = vst [vmem:[%s252 + $0x4] sm:$0xf] %v1396
        %1405 = vst [vmem:[%s252 + $0xc] sm:$0xf] %v1397
        %1406 = vst [vmem:[%s252 + $0x14] sm:$0xf] %v1398
        %1407 = vst [vmem:[%s252 + $0x1c] sm:$0xf] %v1399
        %1408 = vst [vmem:[%s252 + $0x24] sm:$0xf] %v1400
        %1409 = vst [vmem:[%s252 + $0x2c] sm:$0xf] %v1401
        %1410 = vst [vmem:[%s252 + $0x34] sm:$0xf] %v1402
        %1411 = vst [vmem:[%s252 + $0x3c] sm:$0xf] %v1403
        %1412 = vst [vmem:[%s258] sm:$0x1] %v1373
        %1413 = vst [vmem:[%s264] sm:$0x1] %v1395
        %s1414 = sand.u32 %s95, 1
        %s1415 = scalar_lea.sflag [#allocation4], %s1414
        %s1416 = sand.u32 %s95, 1
        %s1417 = smul.addr %s1416, 64
        %s1418 = scalar_lea.vmem [#allocation7], %s1417
        %s1419 = sand.u32 %s26, 1
        %s1420 = scalar_lea.sflag [#allocation9], %s1419
        %s1421 = sand.u32 %s123, 1
        %s1422 = scalar_lea.vmem [#allocation8], %s1421
        %s1423 = sand.u32 %s26, 1
        %s1424 = scalar_lea.sflag [#allocation9], %s1423
        %s1425 = sand.u32 %s151, 1
        %s1426 = scalar_lea.vmem [#allocation10], %s1425
        // Predicated region
        $region37: #{tpu_custom_call.1} parent=27 // pred_check
          %p1427 = pneg %p105
        $region38: #{tpu_custom_call.1} parent=27 // pred_check_branch
          %1429 = sbr.rel (%p1427) target = $region40
        $region39: #{tpu_custom_call.1} parent=27 // pred_region
          %s1431 = ssub.s32 1024, 1024
          %1432 = vsyncadd %s1415, %s1431
          %s1433 = smul.addr %s31, 2
          %s1434 = smul.addr %s30, 32
          %s1435 = sadd.s32 %s1433, %s1434
          %s1436 = smul.addr %s1435, 64
          %s1437 = scalar_lea.hbm %s2, %s1436
          %s1438 = sshll.u32 %s1418, 4
          %s1439 = int_to_ptr.vmem [resolvable:$true] %s1438
          %1444 = dma.vmem_to_hbm [thread:$0]  %s1439, 1024, %s1437, %s1415, 128, 256, 8
        $region40: #{tpu_custom_call.1} parent=27 // pred_fallthru
          _
        // Predicated region
        $region41: #{tpu_custom_call.1} parent=27 // pred_check
          %p1445 = pneg %p133
        $region42: #{tpu_custom_call.1} parent=27 // pred_check_branch
          %1447 = sbr.rel (%p1445) target = $region44
        $region43: #{tpu_custom_call.1} parent=27 // pred_region
          %s1449 = ssub.s32 16, 16
          %1450 = vsyncadd %s1420, %s1449
          %s1451 = smul.addr %s30, 2
          %s1452 = sadd.s32 %s31, %s1451
          %s1453 = smul.addr %s1452, 16
          %s1454 = scalar_lea.hbm %s3, %s1453
          %s1456 = sshll.u32 %s1422, 4
          %s1457 = int_to_ptr.vmem [resolvable:$true] %s1456
          %1459 = dma.vmem_to_hbm [thread:$0]  %s1457, 16, %s1454, %s1420
        $region44: #{tpu_custom_call.1} parent=27 // pred_fallthru
          _
        // Predicated region
        $region45: #{tpu_custom_call.1} parent=27 // pred_check
          %p1460 = pneg %p161
        $region46: #{tpu_custom_call.1} parent=27 // pred_check_branch
          %1462 = sbr.rel (%p1460) target = $region48
        $region47: #{tpu_custom_call.1} parent=27 // pred_region
          %s1464 = ssub.s32 16, 16
          %1465 = vsyncadd %s1424, %s1464
          %s1466 = smul.addr %s30, 2
          %s1467 = sadd.s32 %s31, %s1466
          %s1468 = smul.addr %s1467, 16
          %s1469 = scalar_lea.hbm %s4, %s1468
          %s1471 = sshll.u32 %s1426, 4
          %s1472 = int_to_ptr.vmem [resolvable:$true] %s1471
          %1474 = dma.vmem_to_hbm [thread:$0]  %s1472, 16, %s1469, %s1424
        $region48: #{tpu_custom_call.1} parent=27 // pred_fallthru
          _
      $region28: #{tpu_custom_call.1} parent=5 // pred_fallthru
        _
      %p1475 = scmp.le.s32.totalorder 2, %s21
      // Predicated region
      $region49: #{tpu_custom_call.1} parent=5 // pred_check
        %p1476 = pneg %p1475
      $region50: #{tpu_custom_call.1} parent=5 // pred_check_branch
        %1478 = sbr.rel (%p1476) target = $region52
      $region51: #{tpu_custom_call.1} parent=5 // pred_region
        %s1479 = ssub.s32 %s21, 2
        // Predicated region
        $region53: #{tpu_custom_call.1} parent=51 // pred_check
          %p1480 = pneg %p111
        $region54: #{tpu_custom_call.1} parent=51 // pred_check_branch
          %1482 = sbr.rel (%p1480) target = $region56
        $region55: #{tpu_custom_call.1} parent=51 // pred_region
          %s1483 = sand.u32 %s96, 1
          %s1484 = scalar_lea.sflag [#allocation4], %s1483
          %s1485 = sand.u32 %s96, 1
          %s1486 = smul.addr %s1485, 64
          %s1487 = scalar_lea.vmem [#allocation7], %s1486
          %1488 = dma.done %s1484, 1024
        $region56: #{tpu_custom_call.1} parent=51 // pred_fallthru
          _
        // Predicated region
        $region57: #{tpu_custom_call.1} parent=51 // pred_check
          %p1489 = pneg %p139
        $region58: #{tpu_custom_call.1} parent=51 // pred_check_branch
          %1491 = sbr.rel (%p1489) target = $region60
        $region59: #{tpu_custom_call.1} parent=51 // pred_region
          %s1492 = sand.u32 %s27, 1
          %s1493 = scalar_lea.sflag [#allocation9], %s1492
          %s1494 = sand.u32 %s124, 1
          %s1495 = scalar_lea.vmem [#allocation8], %s1494
          %1496 = dma.done %s1493, 16
        $region60: #{tpu_custom_call.1} parent=51 // pred_fallthru
          _
        // Predicated region
        $region61: #{tpu_custom_call.1} parent=51 // pred_check
          %p1497 = pneg %p167
        $region62: #{tpu_custom_call.1} parent=51 // pred_check_branch
          %1499 = sbr.rel (%p1497) target = $region64
        $region63: #{tpu_custom_call.1} parent=51 // pred_region
          %s1500 = sand.u32 %s27, 1
          %s1501 = scalar_lea.sflag [#allocation9], %s1500
          %s1502 = sand.u32 %s152, 1
          %s1503 = scalar_lea.vmem [#allocation10], %s1502
          %1504 = dma.done %s1501, 16
        $region64: #{tpu_custom_call.1} parent=51 // pred_fallthru
          _
      $region52: #{tpu_custom_call.1} parent=5 // pred_fallthru
        _
    $region6: #{tpu_custom_call.1} parent=1 // loop_footer
      %s25 = sadd.s32 1, %s21
    $region7: #{tpu_custom_call.1} parent=1 // loop_footer_branch
      %20 = sbr.rel target = $region3
    $region8: #{tpu_custom_call.1} parent=1 // loop_exit
      _
    %1505 = vsyncpa [#allocation3], 1
    %s1506 = scalar_lea.sflag [#allocation3], 1
    %1507 = vsyncpa %s1506, 1
    %1508 = vsyncpa [#allocation6], 1
    %1509 = vsyncpa [#allocation4], 1
    %s1510 = scalar_lea.sflag [#allocation4], 1
    %1511 = vsyncpa %s1510, 1
    %1512 = vsyncpa [#allocation9], 1
    %s1513 = scalar_lea.sflag [#allocation9], 1
    %1514 = vsyncpa %s1513, 1

</llo_original>
